<compile_context>
chip_gen: v5e
topology: v5e:2x2
jax: 0.10.0
libtpu: 0.0.40
codegen_flags: <defaults>
</compile_context>

<pallas_src>
import functools
import random

import jax
import jax.numpy as jnp
from jax import lax
from jax.experimental import pallas as pl
from jax.experimental.pallas import tpu as pltpu


# ---------------------------------------------------------------------------
# Generic helpers
# ---------------------------------------------------------------------------
def _round_up(x, m):
    return (x + m - 1) // m * m


def _vmem_capacity_bytes():
    try:
        return int(pltpu.get_tpu_info().vmem_capacity_bytes)
    except Exception:
        return 64 * 1024 * 1024      # conservative default (v7x per-TC VMEM)


def _clamp_vmem_limit(requested_bytes):
    cap = _vmem_capacity_bytes()
    return int(min(int(cap * 0.9), max(int(requested_bytes), 32 << 20)))


# ---------------------------------------------------------------------------
# Fused task network kernel: stem -> encoder -> head (all 1x1 convs)
# Layout: x block (Cin, tile_hw), weights (Cout_l, Cin_l), biases (Cout_l, 1)
# ---------------------------------------------------------------------------
def _tasknet_kernel(x_ref, w1_ref, b1_ref, w2_ref, b2_ref, w3_ref, b3_ref,
                    o_ref):
    hp = lax.Precision.HIGHEST
    h = jnp.dot(w1_ref[...], x_ref[...],
                preferred_element_type=jnp.float32, precision=hp)
    h = jnp.maximum(h + b1_ref[...], 0.0)                        # stem + relu
    h = jnp.dot(w2_ref[...], h,
                preferred_element_type=jnp.float32, precision=hp)
    h = jnp.maximum(h + b2_ref[...], 0.0)                        # encoder+relu
    y = jnp.dot(w3_ref[...], h,
                preferred_element_type=jnp.float32, precision=hp)
    o_ref[...] = (y + b3_ref[...]).astype(o_ref.dtype)           # head


def _pick_hw_tile(hw_padded, rows_per_lane, vmem_budget_bytes, target=16384):
    """Largest 128-multiple lane tile that divides hw_padded, is <= target and
    keeps ~rows_per_lane f32 rows of that width inside vmem_budget_bytes."""
    max_fit = (vmem_budget_bytes // (4 * max(rows_per_lane, 1))) // 128 * 128
    t = max(128, min(hw_padded, target, max_fit))
    t = t // 128 * 128
    while hw_padded % t != 0:
        t -= 128
    return t


def tasknet_forward(x_nchw, w1, b1, w2, b2, w3, b3):
    """x: (N, Cin, H, W) f32; weights (Cout_l, Cin_l); biases (Cout_l,).

    Channels sit on the sublane axis, the spatial tile on the lane axis, so no
    transpose is needed (NCHW reshapes to (N, Cin, H*W) for free), the output
    stores are lane-dense and the intermediates never round-trip to HBM.
    """
    N, Cin, H, W = x_nchw.shape
    HW = H * W
    hid = w1.shape[0]
    Cout = w3.shape[0]

    cap = _vmem_capacity_bytes()
    HWp = _round_up(HW, 128)
    x3 = x_nchw.reshape(N, Cin, HW)                 # free reshape, no transpose
    if HWp != HW:
        x3 = jnp.pad(x3, ((0, 0), (0, 0), (0, HWp - HW)))

    # f32 lane-width rows alive per grid step: double-buffered x/out blocks
    # plus the two hidden intermediates.
    rows = 2 * (Cin + Cout) + 2 * hid
    thw = _pick_hw_tile(HWp, rows, cap // 4)
    vlim = _clamp_vmem_limit(4 * thw * rows + (8 << 20))

    out3 = pl.pallas_call(
        _tasknet_kernel,
        out_shape=jax.ShapeDtypeStruct((N, Cout, HWp), jnp.float32),
        grid=(N, HWp // thw),
        in_specs=[
            pl.BlockSpec((None, Cin, thw), lambda n, j: (n, 0, j)),
            pl.BlockSpec((hid, Cin), lambda n, j: (0, 0)),
            pl.BlockSpec((hid, 1), lambda n, j: (0, 0)),
            pl.BlockSpec((hid, hid), lambda n, j: (0, 0)),
            pl.BlockSpec((hid, 1), lambda n, j: (0, 0)),
            pl.BlockSpec((Cout, hid), lambda n, j: (0, 0)),
            pl.BlockSpec((Cout, 1), lambda n, j: (0, 0)),
        ],
        out_specs=pl.BlockSpec((None, Cout, thw), lambda n, j: (n, 0, j)),
        compiler_params=pltpu.CompilerParams(
            dimension_semantics=("parallel", "parallel"),
            vmem_limit_bytes=vlim),
    )(x3, w1, b1.reshape(hid, 1), w2, b2.reshape(hid, 1), w3,
      b3.reshape(Cout, 1))
    if HWp != HW:
        out3 = out3[:, :, :HW]
    # TODO(synk): on v6e/v7x this HBM-bound forward could stream x/weights in
    # bf16 (f32 accumulation) for ~2x less traffic; kept f32 to match the f32
    # reference within 1e-3.
    return out3.reshape(N, Cout, H, W)


# ---------------------------------------------------------------------------
# PCGrad (Gram-matrix reformulation)
# ---------------------------------------------------------------------------
def _projection_weights(gram, num_tasks, order):
    """PCGrad projection loop on lane-major (1, T) coefficient rows.

    pc[s] = sum_t c[s][t] * g_t, so the whole sequential projection only needs
    the (T, T) Gram matrix.  `order` is the host-static shuffle order, so the
    double loop fully unrolls at trace time.  Returns the combined coefficient
    row w of shape (1, T): new_grads = w @ G.
    """
    cidx = lax.broadcasted_iota(jnp.int32, (1, num_tasks), 1)
    basis = [(cidx == t).astype(jnp.float32) for t in range(num_tasks)]
    cs = list(basis)
    for s in range(num_tasks):
        for j in range(num_tasks):
            r = int(order[s * num_tasks + j])          # static index
            g_row = gram[r:r + 1, :]                   # (1, T); gram symmetric
            d = jnp.sum(cs[s] * g_row, axis=1, keepdims=True)      # (1, 1)
            nsq = gram[r:r + 1, r:r + 1]               # ||g_r||^2
            coef = jnp.where(d < 0.0,
                             d / jnp.where(nsq > 0.0, nsq, 1.0),
                             jnp.zeros_like(d))
            cs[s] = cs[s] - coef * basis[r]
    w = cs[0]
    for s in range(1, num_tasks):
        w = w + cs[s]
    return w


def _pcgrad_fused_kernel(g_ref, o_ref, *, num_tasks, order):
    """Single-pass PCGrad: whole (T, n) grad matrix resident in VMEM."""
    hp = lax.Precision.HIGHEST
    g = g_ref[...]
    gram = lax.dot_general(g, g, (((1,), (1,)), ((), ())),
                           preferred_element_type=jnp.float32, precision=hp)
    w = _projection_weights(gram, num_tasks, order)
    o_ref[...] = jnp.dot(w, g, preferred_element_type=jnp.float32,
                         precision=hp)


def _pcgrad_gram_kernel(g_ref, gram_ref):
    """Pass 1: partial Gram = G_c @ G_c^T accumulated over lane blocks.
    Leading grid axis is 'parallel' so v7x's two TCs each own one partial."""
    @pl.when(pl.program_id(1) == 0)
    def _():
        gram_ref[...] = jnp.zeros_like(gram_ref)
    g = g_ref[...]                                          # (T, tile_n)
    gram_ref[...] += lax.dot_general(
        g, g, (((1,), (1,)), ((), ())),
        preferred_element_type=jnp.float32, precision=lax.Precision.HIGHEST)


def _pcgrad_apply_kernel(gram_ref, g_ref, o_ref, *, num_tasks, order):
    """Pass 2: sum the partial Grams, re-derive the tiny coefficient row and
    emit new_grads[block] = w @ G[block] with one MXU matmul (lane-dense)."""
    gram = gram_ref[0] + gram_ref[1]                        # (T, T)
    w = _projection_weights(gram, num_tasks, order)         # (1, T)
    o_ref[...] = jnp.dot(w, g_ref[...],
                         preferred_element_type=jnp.float32,
                         precision=lax.Precision.HIGHEST)


def pcgrad_combine(grad_rows, order, *, force_two_pass=False):
    """grad_rows: (T, n) f32 stacked per-task flattened encoder gradients.
    order: host list of T*T ints (shuffle order).  Returns (n,) combined
    PCGrad gradient vector."""
    T, n = grad_rows.shape
    order_t = tuple(int(i) for i in order)
    cap = _vmem_capacity_bytes()
    n128 = _round_up(n, 128)

    # ---- fused single-pass path: whole matrix resident in VMEM ------------
    fused_need = 2 * (T + 1) * n128 * 4 + (4 << 20)
    if not force_two_pass and fused_need <= cap // 2:
        mat = jnp.pad(grad_rows, ((0, 0), (0, n128 - n)))
        out = pl.pallas_call(
            functools.partial(_pcgrad_fused_kernel, num_tasks=T,
                              order=order_t),
            out_shape=jax.ShapeDtypeStruct((1, n128), jnp.float32),
            compiler_params=pltpu.CompilerParams(
                vmem_limit_bytes=_clamp_vmem_limit(fused_need)),
        )(mat)
        return out[0, :n]

    # ---- two-pass streaming path -------------------------------------------
    # Blocks of a few MiB so each grid step moves roofline-sized DMAs; clamped
    # to the per-generation VMEM capacity (64 MiB/TC on v7x, 128 MiB v5e/v6e).
    block_bytes = min(8 << 20, cap // 8)
    tile_n = max(128, (block_bytes // (4 * T)) // 128 * 128)
    nb = 2 * pl.cdiv(n128, 2 * tile_n)       # even block count -> 2-way split
    tile_n = _round_up(pl.cdiv(n128, nb), 128)
    n_pad = nb * tile_n
    nb_half = nb // 2
    mat = jnp.pad(grad_rows, ((0, 0), (0, n_pad - n)))
    vlim = _clamp_vmem_limit(2 * (T + 1) * tile_n * 4 + (4 << 20))

    gram_parts = pl.pallas_call(
        _pcgrad_gram_kernel,
        out_shape=jax.ShapeDtypeStruct((2, T, T), jnp.float32),
        grid=(2, nb_half),
        in_specs=[pl.BlockSpec((T, tile_n),
                               lambda c, j: (0, c * nb_half + j))],
        out_specs=pl.BlockSpec((None, T, T), lambda c, j: (c, 0, 0)),
        compiler_params=pltpu.CompilerParams(
            dimension_semantics=("parallel", "arbitrary"),
            vmem_limit_bytes=vlim),
    )(mat)

    out = pl.pallas_call(
        functools.partial(_pcgrad_apply_kernel, num_tasks=T, order=order_t),
        out_shape=jax.ShapeDtypeStruct((1, n_pad), jnp.float32),
        grid=(nb,),
        in_specs=[pl.BlockSpec((2, T, T), lambda i: (0, 0, 0)),
                  pl.BlockSpec((T, tile_n), lambda i: (0, i))],
        out_specs=pl.BlockSpec((1, tile_n), lambda i: (0, i)),
        compiler_params=pltpu.CompilerParams(
            dimension_semantics=("parallel",),
            vmem_limit_bytes=vlim),
    )(gram_parts, mat)
    return out[0, :n]


# ---------------------------------------------------------------------------
# Synthetic SingleTaskNetwork (stem -> shared-shape encoder -> head).
# TODO(synk): the real SingleTaskNetwork (backbone/detector/segmentor) is not
# part of the given module; this deterministic stand-in drives PCGrad.
# ---------------------------------------------------------------------------
class SingleTaskNetwork:
    def __init__(self, key, in_ch, hid_ch, out_ch):
        k0, k1, k2 = jax.random.split(key, 3)
        s = 0.05
        self.stem_w = s * jax.random.normal(k0, (hid_ch, in_ch), jnp.float32)
        self.stem_b = jnp.zeros((hid_ch,), jnp.float32)
        self.enc_w = s * jax.random.normal(k1, (hid_ch, hid_ch), jnp.float32)
        self.enc_b = jnp.zeros((hid_ch,), jnp.float32)
        self.head_w = s * jax.random.normal(k2, (out_ch, hid_ch), jnp.float32)
        self.head_b = jnp.zeros((out_ch,), jnp.float32)

    def encoder_params(self):
        return [self.enc_w, self.enc_b]

    def __call__(self, x):
        return tasknet_forward(x, self.stem_w, self.stem_b,
                               self.enc_w, self.enc_b,
                               self.head_w, self.head_b)


class PCGradMTL:
    def __init__(self, task_cfg, key, in_ch, hid_ch):
        keys = jax.random.split(key, len(task_cfg))
        self.task_single_network = {
            data: SingleTaskNetwork(keys[i], in_ch, hid_ch, cfg["num_classes"])
            for i, (data, cfg) in enumerate(task_cfg.items())
        }
        self.datasets = list(task_cfg.keys())
        self.dataset_index = list(range(len(self.datasets)))
        self.base_dataset = self.datasets[0]
        each = [int(p.size) for p in self.get_shared_encoder_params()]
        self.each_param_numel = each
        self.all_shared_params_numel = sum(each)
        self.training = True

    def get_shared_encoder_params(self):
        return self.task_single_network[self.base_dataset].encoder_params()

    @staticmethod
    def _grad2vec(grads_for_task):
        # torch .view(-1) order == row-major reshape(-1)
        return jnp.concatenate([g.reshape(-1) for g in grads_for_task])

    def make_shuffle_order(self, seed=0):
        rng = random.Random(seed)
        rows = []
        for _ in self.datasets:
            idx = list(range(len(self.datasets)))
            rng.shuffle(idx)
            rows.extend(idx)
        return rows

    def compute_pcgrad(self, encoder_grads, seed=0, force_two_pass=False):
        # encoder_grads: {dataset: [arrays matching encoder param shapes]}
        # (stands in for param.grad populated externally by loss.backward()).
        vecs = jnp.stack([self._grad2vec(encoder_grads[k])
                          for k in self.datasets])              # (T, n)
        order = self.make_shuffle_order(seed)    # host-static shuffle order
        new_grads = pcgrad_combine(vecs, order,
                                   force_two_pass=force_two_pass)
        # _reset_grad + _transfer_computed_grad: unflatten to param shapes
        new_param_grads, beg = [], 0
        for p, nel in zip(self.get_shared_encoder_params(),
                          self.each_param_numel):
            new_param_grads.append(new_grads[beg:beg + nel].reshape(p.shape))
            beg += nel
        return new_param_grads, new_grads

    def __call__(self, data_dict, kwargs):
        if self.training:
            task_output = self.task_single_network[kwargs["dataset"]](data_dict)
        else:
            dset = list(kwargs["task_list"].keys())[0]
            task_output = self.task_single_network[dset](data_dict)
        return task_output


# ---------------------------------------------------------------------------
if __name__ == "__main__":
    key = jax.random.PRNGKey(0)
    k_model, k_x, k_g = jax.random.split(key, 3)

    task_cfg = {
        "cityscapes": {"num_classes": 8},
        "coco": {"num_classes": 8},
        "voc": {"num_classes": 8},
    }
    in_ch, hid_ch = 4, 32
    model = PCGradMTL(task_cfg, k_model, in_ch, hid_ch)

    # forward (training mode dispatch on kwargs['dataset'])
    x = jax.random.normal(k_x, (2, in_ch, 16, 16), jnp.float32)   # NCHW
    out = jax.block_until_ready(model(x, {"dataset": "cityscapes"}))
    assert out.shape == (2, 8, 16, 16)

    # pure-JAX reference check of the fused conv forward
    net = model.task_single_network["cityscapes"]

    def ref_conv(h, w, b, relu):
        y = jnp.einsum("oc,nchw->nohw", w, h,
                       precision=lax.Precision.HIGHEST)
        y = y + b[None, :, None, None]
        return jnp.maximum(y, 0.0) if relu else y

    ref_out = ref_conv(ref_conv(ref_conv(x, net.stem_w, net.stem_b, True),
                                net.enc_w, net.enc_b, True),
                       net.head_w, net.head_b, False)
    assert jnp.allclose(out, ref_out, rtol=1e-3, atol=1e-3), "forward mismatch"

    # eval-mode dispatch path
    model.training = False
    out_eval = jax.block_until_ready(model(x, {"task_list": {"coco": None}}))
    assert out_eval.shape == (2, 8, 16, 16)
    model.training = True

    # synthetic per-task encoder gradients (stand-in for .grad from backward)
    grads = {}
    gkeys = jax.random.split(k_g, len(model.datasets))
    for gk, d in zip(gkeys, model.datasets):
        k1, k2 = jax.random.split(gk)
        grads[d] = [jax.random.normal(k1, (hid_ch, hid_ch), jnp.float32),
                    jax.random.normal(k2, (hid_ch,), jnp.float32)]

    # fused single-pass PCGrad path (grad matrix fits VMEM)
    new_param_grads, new_vec = model.compute_pcgrad(grads, seed=0)
    jax.block_until_ready(new_vec)
    assert new_param_grads[0].shape == (hid_ch, hid_ch)
    assert new_param_grads[1].shape == (hid_ch,)

    # two-pass streaming PCGrad path (dual-TC Gram split + MXU apply)
    _, new_vec_2p = model.compute_pcgrad(grads, seed=0, force_two_pass=True)
    jax.block_until_ready(new_vec_2p)

    # pure-JAX reference check of the PCGrad projection math
    order = model.make_shuffle_order(0)
    T = len(model.datasets)
    origin = {k: model._grad2vec(grads[k]) for k in model.datasets}
    pc = {k: origin[k] for k in model.datasets}
    for si, sd in enumerate(model.datasets):
        for j in range(T):
            rd = model.datasets[order[si * T + j]]
            d = jnp.dot(pc[sd], origin[rd], precision=lax.Precision.HIGHEST)
            if float(d) < 0:
                pc[sd] = pc[sd] - d * origin[rd] / jnp.sum(origin[rd] ** 2)
    ref = sum(pc.values())
    assert jnp.allclose(new_vec, ref, rtol=1e-3, atol=1e-3), \
        "PCGrad (fused) mismatch"
    assert jnp.allclose(new_vec_2p, ref, rtol=1e-3, atol=1e-3), \
        "PCGrad (two-pass) mismatch"

    print("KERNEL_OK")
</pallas_src>

<mosaic_0001>
module attributes {stable_mosaic.version = 11 : i64} {
  func.func @_tasknet_kernel(%arg0: i32, %arg1: i32, %arg2: memref<1x4x256xf32, #tpu.memory_space<vmem>>, %arg3: memref<32x4xf32, #tpu.memory_space<vmem>>, %arg4: memref<32x1xf32, #tpu.memory_space<vmem>>, %arg5: memref<32x32xf32, #tpu.memory_space<vmem>>, %arg6: memref<32x1xf32, #tpu.memory_space<vmem>>, %arg7: memref<8x32xf32, #tpu.memory_space<vmem>>, %arg8: memref<8x1xf32, #tpu.memory_space<vmem>>, %arg9: memref<1x8x256xf32, #tpu.memory_space<vmem>>) attributes {dimension_semantics = [#tpu.dimension_semantics<parallel>, #tpu.dimension_semantics<parallel>], iteration_bounds = array<i64: 2, 1>, scalar_prefetch = 0 : i64, scratch_operands = 0 : i64, tpu.core_type = #tpu.core_type<tc>, window_params = [{transform_indices = @transform_0, window_bounds = array<i64: 1, 4, 256>}, {pipeline_mode = #tpu.pipeline_mode<synchronous>, transform_indices = @transform_1, window_bounds = array<i64: 32, 4>}, {pipeline_mode = #tpu.pipeline_mode<synchronous>, transform_indices = @transform_2, window_bounds = array<i64: 32, 1>}, {pipeline_mode = #tpu.pipeline_mode<synchronous>, transform_indices = @transform_3, window_bounds = array<i64: 32, 32>}, {pipeline_mode = #tpu.pipeline_mode<synchronous>, transform_indices = @transform_4, window_bounds = array<i64: 32, 1>}, {pipeline_mode = #tpu.pipeline_mode<synchronous>, transform_indices = @transform_5, window_bounds = array<i64: 8, 32>}, {pipeline_mode = #tpu.pipeline_mode<synchronous>, transform_indices = @transform_6, window_bounds = array<i64: 8, 1>}, {transform_indices = @transform_7, window_bounds = array<i64: 1, 8, 256>}]} {
    %c0 = arith.constant 0 : index
    %c0_0 = arith.constant 0 : index
    %0 = vector.load %arg3[%c0, %c0_0] : memref<32x4xf32, #tpu.memory_space<vmem>>, vector<32x4xf32>
    %c0_1 = arith.constant 0 : index
    %c0_2 = arith.constant 0 : index
    %c0_3 = arith.constant 0 : index
    %1 = vector.load %arg2[%c0_1, %c0_2, %c0_3] : memref<1x4x256xf32, #tpu.memory_space<vmem>>, vector<1x4x256xf32>
    %2 = vector.shape_cast %1 : vector<1x4x256xf32> to vector<4x256xf32>
    %cst = arith.constant dense<0.000000e+00> : vector<32x256xf32>
    %3 = tpu.matmul %0, %2, %cst {dimension_numbers = #tpu.dot_dimension_numbers<[1], [0], [0], [1], [0, 0, 1, 1], [], []>, precision = #tpu.contract_precision<fp32>} : vector<32x4xf32>, vector<4x256xf32>, vector<32x256xf32> -> vector<32x256xf32>
    %c0_4 = arith.constant 0 : index
    %c0_5 = arith.constant 0 : index
    %4 = vector.load %arg4[%c0_4, %c0_5] : memref<32x1xf32, #tpu.memory_space<vmem>>, vector<32x1xf32>
    %5 = vector.broadcast %4 : vector<32x1xf32> to vector<32x256xf32>
    %6 = arith.addf %3, %5 : vector<32x256xf32>
    %cst_6 = arith.constant 0.000000e+00 : f32
    %7 = vector.broadcast %cst_6 : f32 to vector<32x256xf32>
    %8 = arith.maximumf %6, %7 : vector<32x256xf32>
    %c0_7 = arith.constant 0 : index
    %c0_8 = arith.constant 0 : index
    %9 = vector.load %arg5[%c0_7, %c0_8] : memref<32x32xf32, #tpu.memory_space<vmem>>, vector<32x32xf32>
    %cst_9 = arith.constant dense<0.000000e+00> : vector<32x256xf32>
    %10 = tpu.matmul %9, %8, %cst_9 {dimension_numbers = #tpu.dot_dimension_numbers<[1], [0], [0], [1], [0, 0, 1, 1], [], []>, precision = #tpu.contract_precision<fp32>} : vector<32x32xf32>, vector<32x256xf32>, vector<32x256xf32> -> vector<32x256xf32>
    %c0_10 = arith.constant 0 : index
    %c0_11 = arith.constant 0 : index
    %11 = vector.load %arg6[%c0_10, %c0_11] : memref<32x1xf32, #tpu.memory_space<vmem>>, vector<32x1xf32>
    %12 = vector.broadcast %11 : vector<32x1xf32> to vector<32x256xf32>
    %13 = arith.addf %10, %12 : vector<32x256xf32>
    %cst_12 = arith.constant 0.000000e+00 : f32
    %14 = vector.broadcast %cst_12 : f32 to vector<32x256xf32>
    %15 = arith.maximumf %13, %14 : vector<32x256xf32>
    %c0_13 = arith.constant 0 : index
    %c0_14 = arith.constant 0 : index
    %16 = vector.load %arg7[%c0_13, %c0_14] : memref<8x32xf32, #tpu.memory_space<vmem>>, vector<8x32xf32>
    %cst_15 = arith.constant dense<0.000000e+00> : vector<8x256xf32>
    %17 = tpu.matmul %16, %15, %cst_15 {dimension_numbers = #tpu.dot_dimension_numbers<[1], [0], [0], [1], [0, 0, 1, 1], [], []>, precision = #tpu.contract_precision<fp32>} : vector<8x32xf32>, vector<32x256xf32>, vector<8x256xf32> -> vector<8x256xf32>
    %c0_16 = arith.constant 0 : index
    %c0_17 = arith.constant 0 : index
    %18 = vector.load %arg8[%c0_16, %c0_17] : memref<8x1xf32, #tpu.memory_space<vmem>>, vector<8x1xf32>
    %19 = vector.broadcast %18 : vector<8x1xf32> to vector<8x256xf32>
    %20 = arith.addf %17, %19 : vector<8x256xf32>
    %c0_18 = arith.constant 0 : index
    %c0_19 = arith.constant 0 : index
    %c0_20 = arith.constant 0 : index
    %21 = vector.load %arg9[%c0_18, %c0_19, %c0_20] : memref<1x8x256xf32, #tpu.memory_space<vmem>>, vector<1x8x256xf32>
    %22 = vector.shape_cast %21 : vector<1x8x256xf32> to vector<8x256xf32>
    %23 = vector.shape_cast %20 : vector<8x256xf32> to vector<1x8x256xf32>
    tpu.vector_store %arg9[%c0_18, %c0_19, %c0_20], %23 {strides = array<i32>} : memref<1x8x256xf32, #tpu.memory_space<vmem>>, vector<1x8x256xf32>,
    return
  }
  func.func @transform_0(%arg0: i32, %arg1: i32) -> (i32, i32, i32) {
    %c0_i32 = arith.constant 0 : i32
    %c0_i32_0 = arith.constant 0 : i32
    return %arg0, %c0_i32, %arg1 : i32, i32, i32
  }
  func.func @transform_1(%arg0: i32, %arg1: i32) -> (i32, i32) {
    %c0_i32 = arith.constant 0 : i32
    %c0_i32_0 = arith.constant 0 : i32
    %c0_i32_1 = arith.constant 0 : i32
    return %c0_i32, %c0_i32_0 : i32, i32
  }
  func.func @transform_2(%arg0: i32, %arg1: i32) -> (i32, i32) {
    %c0_i32 = arith.constant 0 : i32
    %c0_i32_0 = arith.constant 0 : i32
    %c0_i32_1 = arith.constant 0 : i32
    return %c0_i32, %c0_i32_0 : i32, i32
  }
  func.func @transform_3(%arg0: i32, %arg1: i32) -> (i32, i32) {
    %c0_i32 = arith.constant 0 : i32
    %c0_i32_0 = arith.constant 0 : i32
    %c0_i32_1 = arith.constant 0 : i32
    return %c0_i32, %c0_i32_0 : i32, i32
  }
  func.func @transform_4(%arg0: i32, %arg1: i32) -> (i32, i32) {
    %c0_i32 = arith.constant 0 : i32
    %c0_i32_0 = arith.constant 0 : i32
    %c0_i32_1 = arith.constant 0 : i32
    return %c0_i32, %c0_i32_0 : i32, i32
  }
  func.func @transform_5(%arg0: i32, %arg1: i32) -> (i32, i32) {
    %c0_i32 = arith.constant 0 : i32
    %c0_i32_0 = arith.constant 0 : i32
    %c0_i32_1 = arith.constant 0 : i32
    return %c0_i32, %c0_i32_0 : i32, i32
  }
  func.func @transform_6(%arg0: i32, %arg1: i32) -> (i32, i32) {
    %c0_i32 = arith.constant 0 : i32
    %c0_i32_0 = arith.constant 0 : i32
    %c0_i32_1 = arith.constant 0 : i32
    return %c0_i32, %c0_i32_0 : i32, i32
  }
  func.func @transform_7(%arg0: i32, %arg1: i32) -> (i32, i32, i32) {
    %c0_i32 = arith.constant 0 : i32
    %c0_i32_0 = arith.constant 0 : i32
    return %arg0, %c0_i32, %arg1 : i32, i32, i32
  }
}

</mosaic_0001>

<llo_original>
// kernel: tpu_custom_call.1
$region0: #{tpu_custom_call.1}
  #allocation0 [shape = 'u32[]', space=smem, size = 0x4, offset = 0x4, fixed_abs, tag = 'smem constant byte address 0x4 - core index']
  #allocation1 [shape = 'u32[72,128]{1,0:T(1,128)}', space=vmem, size = 0x9000, scoped, tag = 'internal scratch']
  %s0 = inlined_call_operand.vmem [shape: f32[2,4,256], index: 0, kind: input, shape index: {}]
  %s1 = inlined_call_operand.vmem [shape: f32[32,4], index: 1, kind: input, shape index: {}]
  %s2 = inlined_call_operand.vmem [shape: f32[32,1], index: 2, kind: input, shape index: {}]
  %s3 = inlined_call_operand.vmem [shape: f32[32,32], index: 3, kind: input, shape index: {}]
  %s4 = inlined_call_operand.vmem [shape: f32[32,1], index: 4, kind: input, shape index: {}]
  %s5 = inlined_call_operand.vmem [shape: f32[8,32], index: 5, kind: input, shape index: {}]
  %s6 = inlined_call_operand.vmem [shape: f32[8,1], index: 6, kind: input, shape index: {}]
  %s7 = inlined_call_operand.hbm [shape: f32[2,8,256], index: 7, kind: output, shape index: {}]
  %s8 = sld [smem:[#allocation0]]
  $region61: #{tpu_custom_call.1} parent=0
    _
  %s10 = ssub.s32 1, %s8
  %s11 = scalar_select 0, %s10, %s8
  $region1: #{tpu_custom_call.1} parent=0
    #allocation2 [shape = 'u8[16384]{0}', space=vmem, size = 0x4000, scoped, tag = 'output window, operand 0']
    #allocation3 [shape = 's32[2]{0}', space=sflag, size = 0x8, scoped, tag = 'scoped memory for tpu_custom_call.1']
    %12 = vsyncpa [#allocation3], 0
    %s13 = scalar_lea.sflag [#allocation3], 1
    %14 = vsyncpa %s13, 0
    loop: start=0, step=1, limit=4
    $region2: #{tpu_custom_call.1} parent=1 // loop_pre_header
      _
    $region3: #{tpu_custom_call.1} parent=1 // loop_header
      %s16 = sphi 0, %s20
      %p17 = scmp.ge.s32.totalorder %s16, 4
      %s23 = sphi 0, %s35
      %s24 = sphi 0, %s31
      %s25 = sphi 0, %s23
      %s26 = sphi 0, %s24
      %s27 = sphi 0, %s25
      %s28 = sphi 0, %s26
      %s40 = sphi 0, %s42
      %s43 = sphi 0, %s40
      %s44 = sphi 0, %s43
      %s60 = sphi 0, %s44
      %s64 = sphi 0, %s64
      %s66 = sphi 0, %s64
      %s67 = sphi 0, %s66
      %s81 = sphi 0, %s67
      %s85 = sphi 0, %s85
      %s87 = sphi 0, %s85
      %s88 = sphi 0, %s87
      %s102 = sphi 0, %s88
      %s106 = sphi 0, %s106
      %s108 = sphi 0, %s106
      %s109 = sphi 0, %s108
      %s123 = sphi 0, %s109
      %s127 = sphi 0, %s127
      %s129 = sphi 0, %s127
      %s130 = sphi 0, %s129
      %s144 = sphi 0, %s130
      %s148 = sphi 0, %s148
      %s150 = sphi 0, %s148
      %s151 = sphi 0, %s150
      %s165 = sphi 0, %s151
      %s169 = sphi 0, %s169
      %s171 = sphi 0, %s169
      %s172 = sphi 0, %s171
      %s186 = sphi 0, %s172
      %s194 = sphi 0, %s196
      %s197 = sphi 0, %s194
      %s198 = sphi 0, %s197
      %s214 = sphi 0, %s198
    $region4: #{tpu_custom_call.1} parent=1 // loop_header_branch
      %19 = sbr.rel (%p17) target = $region8
    $region5: #{tpu_custom_call.1} parent=1 // loop_body
      %s21 = ssub.s32 %s16, 1
      %s22 = ssub.s32 %s16, 2
      %s29 = sadd.s32 1, %s24
      %p30 = scmp.ge.s32.totalorder %s29, 1
      %s31 = scalar_select %p30, 0, %s29
      %s32 = sadd.s32 1, %s23
      %s33 = scalar_select %p30, %s32, %s23
      %p34 = scmp.ge.s32.totalorder %s33, 2
      %s35 = scalar_select %p34, 0, %s33
      %s36 = ssub.s32 %s23, %s35
      %s37 = ssub.s32 %s24, %s31
      %s38 = sor.u32 %s36, %s37
      %p39 = scmp.eq.s32.totalorder %s38, 0
      %s41 = sadd.s32 %s40, 1
      %s42 = scalar_select %p39, %s40, %s41
      %p45 = pneg %p39
      %p46 = scmp.eq.s32.totalorder %s16, 1
      %p47 = por %p45, %p46
      %p48 = scmp.ne.s32.totalorder %s40, %s43
      %p49 = scmp.eq.s32.totalorder %s16, 0
      %p50 = por %p48, %p49
      %p51 = scmp.ne.s32.totalorder %s40, %s43
      %p52 = scmp.eq.s32.totalorder %s21, 1
      %p53 = por %p51, %p52
      %p54 = scmp.ne.s32.totalorder %s43, %s44
      %p55 = scmp.eq.s32.totalorder %s21, 0
      %p56 = por %p54, %p55
      %p57 = scmp.ne.s32.totalorder %s43, %s44
      %p58 = scmp.eq.s32.totalorder %s22, 1
      %p59 = por %p57, %p58
      %p61 = scmp.ne.s32.totalorder %s44, %s60
      %p62 = scmp.eq.s32.totalorder %s22, 0
      %p63 = por %p61, %p62
      %s65 = sadd.s32 %s64, 1
      %p68 = scmp.eq.s32.totalorder %s16, 1
      %p69 = scmp.ne.s32.totalorder %s64, %s66
      %p70 = scmp.eq.s32.totalorder %s16, 0
      %p71 = por %p69, %p70
      %p72 = scmp.ne.s32.totalorder %s64, %s66
      %p73 = scmp.eq.s32.totalorder %s21, 1
      %p74 = por %p72, %p73
      %p75 = scmp.ne.s32.totalorder %s66, %s67
      %p76 = scmp.eq.s32.totalorder %s21, 0
      %p77 = por %p75, %p76
      %p78 = scmp.ne.s32.totalorder %s66, %s67
      %p79 = scmp.eq.s32.totalorder %s22, 1
      %p80 = por %p78, %p79
      %p82 = scmp.ne.s32.totalorder %s67, %s81
      %p83 = scmp.eq.s32.totalorder %s22, 0
      %p84 = por %p82, %p83
      %s86 = sadd.s32 %s85, 1
      %p89 = scmp.eq.s32.totalorder %s16, 1
      %p90 = scmp.ne.s32.totalorder %s85, %s87
      %p91 = scmp.eq.s32.totalorder %s16, 0
      %p92 = por %p90, %p91
      %p93 = scmp.ne.s32.totalorder %s85, %s87
      %p94 = scmp.eq.s32.totalorder %s21, 1
      %p95 = por %p93, %p94
      %p96 = scmp.ne.s32.totalorder %s87, %s88
      %p97 = scmp.eq.s32.totalorder %s21, 0
      %p98 = por %p96, %p97
      %p99 = scmp.ne.s32.totalorder %s87, %s88
      %p100 = scmp.eq.s32.totalorder %s22, 1
      %p101 = por %p99, %p100
      %p103 = scmp.ne.s32.totalorder %s88, %s102
      %p104 = scmp.eq.s32.totalorder %s22, 0
      %p105 = por %p103, %p104
      %s107 = sadd.s32 %s106, 1
      %p110 = scmp.eq.s32.totalorder %s16, 1
      %p111 = scmp.ne.s32.totalorder %s106, %s108
      %p112 = scmp.eq.s32.totalorder %s16, 0
      %p113 = por %p111, %p112
      %p114 = scmp.ne.s32.totalorder %s106, %s108
      %p115 = scmp.eq.s32.totalorder %s21, 1
      %p116 = por %p114, %p115
      %p117 = scmp.ne.s32.totalorder %s108, %s109
      %p118 = scmp.eq.s32.totalorder %s21, 0
      %p119 = por %p117, %p118
      %p120 = scmp.ne.s32.totalorder %s108, %s109
      %p121 = scmp.eq.s32.totalorder %s22, 1
      %p122 = por %p120, %p121
      %p124 = scmp.ne.s32.totalorder %s109, %s123
      %p125 = scmp.eq.s32.totalorder %s22, 0
      %p126 = por %p124, %p125
      %s128 = sadd.s32 %s127, 1
      %p131 = scmp.eq.s32.totalorder %s16, 1
      %p132 = scmp.ne.s32.totalorder %s127, %s129
      %p133 = scmp.eq.s32.totalorder %s16, 0
      %p134 = por %p132, %p133
      %p135 = scmp.ne.s32.totalorder %s127, %s129
      %p136 = scmp.eq.s32.totalorder %s21, 1
      %p137 = por %p135, %p136
      %p138 = scmp.ne.s32.totalorder %s129, %s130
      %p139 = scmp.eq.s32.totalorder %s21, 0
      %p140 = por %p138, %p139
      %p141 = scmp.ne.s32.totalorder %s129, %s130
      %p142 = scmp.eq.s32.totalorder %s22, 1
      %p143 = por %p141, %p142
      %p145 = scmp.ne.s32.totalorder %s130, %s144
      %p146 = scmp.eq.s32.totalorder %s22, 0
      %p147 = por %p145, %p146
      %s149 = sadd.s32 %s148, 1
      %p152 = scmp.eq.s32.totalorder %s16, 1
      %p153 = scmp.ne.s32.totalorder %s148, %s150
      %p154 = scmp.eq.s32.totalorder %s16, 0
      %p155 = por %p153, %p154
      %p156 = scmp.ne.s32.totalorder %s148, %s150
      %p157 = scmp.eq.s32.totalorder %s21, 1
      %p158 = por %p156, %p157
      %p159 = scmp.ne.s32.totalorder %s150, %s151
      %p160 = scmp.eq.s32.totalorder %s21, 0
      %p161 = por %p159, %p160
      %p162 = scmp.ne.s32.totalorder %s150, %s151
      %p163 = scmp.eq.s32.totalorder %s22, 1
      %p164 = por %p162, %p163
      %p166 = scmp.ne.s32.totalorder %s151, %s165
      %p167 = scmp.eq.s32.totalorder %s22, 0
      %p168 = por %p166, %p167
      %s170 = sadd.s32 %s169, 1
      %p173 = scmp.eq.s32.totalorder %s16, 1
      %p174 = scmp.ne.s32.totalorder %s169, %s171
      %p175 = scmp.eq.s32.totalorder %s16, 0
      %p176 = por %p174, %p175
      %p177 = scmp.ne.s32.totalorder %s169, %s171
      %p178 = scmp.eq.s32.totalorder %s21, 1
      %p179 = por %p177, %p178
      %p180 = scmp.ne.s32.totalorder %s171, %s172
      %p181 = scmp.eq.s32.totalorder %s21, 0
      %p182 = por %p180, %p181
      %p183 = scmp.ne.s32.totalorder %s171, %s172
      %p184 = scmp.eq.s32.totalorder %s22, 1
      %p185 = por %p183, %p184
      %p187 = scmp.ne.s32.totalorder %s172, %s186
      %p188 = scmp.eq.s32.totalorder %s22, 0
      %p189 = por %p187, %p188
      %s190 = ssub.s32 %s23, %s35
      %s191 = ssub.s32 %s24, %s31
      %s192 = sor.u32 %s190, %s191
      %p193 = scmp.eq.s32.totalorder %s192, 0
      %s195 = sadd.s32 %s194, 1
      %s196 = scalar_select %p193, %s194, %s195
      %p199 = pneg %p193
      %p200 = scmp.eq.s32.totalorder %s16, 1
      %p201 = por %p199, %p200
      %p202 = scmp.ne.s32.totalorder %s194, %s197
      %p203 = scmp.eq.s32.totalorder %s16, 0
      %p204 = por %p202, %p203
      %p205 = scmp.ne.s32.totalorder %s194, %s197
      %p206 = scmp.eq.s32.totalorder %s21, 1
      %p207 = por %p205, %p206
      %p208 = scmp.ne.s32.totalorder %s197, %s198
      %p209 = scmp.eq.s32.totalorder %s21, 0
      %p210 = por %p208, %p209
      %p211 = scmp.ne.s32.totalorder %s197, %s198
      %p212 = scmp.eq.s32.totalorder %s22, 1
      %p213 = por %p211, %p212
      %p215 = scmp.ne.s32.totalorder %s198, %s214
      %p216 = scmp.eq.s32.totalorder %s22, 0
      %p217 = por %p215, %p216
      %p218 = scmp.le.s32.totalorder 1, %s16
      %p219 = scmp.lt.s32.totalorder %s16, 3
      %p220 = pnand %p218, %p219
      %p221 = pneg %p220
      // Predicated region
      $region9: #{tpu_custom_call.1} parent=5 // pred_check
        _
      $region10: #{tpu_custom_call.1} parent=5 // pred_check_branch
        %223 = sbr.rel (%p220) target = $region12
      $region11: #{tpu_custom_call.1} parent=5 // pred_region
        %s224 = ssub.s32 %s16, 1
        // Predicated region
        $region13: #{tpu_custom_call.1} parent=11 // pred_check
          %p225 = pneg %p77
        $region14: #{tpu_custom_call.1} parent=11 // pred_check_branch
          %227 = sbr.rel (%p225) target = $region16
        $region15: #{tpu_custom_call.1} parent=11 // pred_region
          _
        $region16: #{tpu_custom_call.1} parent=11 // pred_fallthru
          _
        // Predicated region
        $region17: #{tpu_custom_call.1} parent=11 // pred_check
          %p228 = pneg %p98
        $region18: #{tpu_custom_call.1} parent=11 // pred_check_branch
          %230 = sbr.rel (%p228) target = $region20
        $region19: #{tpu_custom_call.1} parent=11 // pred_region
          _
        $region20: #{tpu_custom_call.1} parent=11 // pred_fallthru
          _
        // Predicated region
        $region21: #{tpu_custom_call.1} parent=11 // pred_check
          %p231 = pneg %p119
        $region22: #{tpu_custom_call.1} parent=11 // pred_check_branch
          %233 = sbr.rel (%p231) target = $region24
        $region23: #{tpu_custom_call.1} parent=11 // pred_region
          _
        $region24: #{tpu_custom_call.1} parent=11 // pred_fallthru
          _
        // Predicated region
        $region25: #{tpu_custom_call.1} parent=11 // pred_check
          %p234 = pneg %p140
        $region26: #{tpu_custom_call.1} parent=11 // pred_check_branch
          %236 = sbr.rel (%p234) target = $region28
        $region27: #{tpu_custom_call.1} parent=11 // pred_region
          _
        $region28: #{tpu_custom_call.1} parent=11 // pred_fallthru
          _
        // Predicated region
        $region29: #{tpu_custom_call.1} parent=11 // pred_check
          %p237 = pneg %p161
        $region30: #{tpu_custom_call.1} parent=11 // pred_check_branch
          %239 = sbr.rel (%p237) target = $region32
        $region31: #{tpu_custom_call.1} parent=11 // pred_region
          _
        $region32: #{tpu_custom_call.1} parent=11 // pred_fallthru
          _
        // Predicated region
        $region33: #{tpu_custom_call.1} parent=11 // pred_check
          %p240 = pneg %p182
        $region34: #{tpu_custom_call.1} parent=11 // pred_check_branch
          %242 = sbr.rel (%p240) target = $region36
        $region35: #{tpu_custom_call.1} parent=11 // pred_region
          _
        $region36: #{tpu_custom_call.1} parent=11 // pred_fallthru
          _
      $region12: #{tpu_custom_call.1} parent=5 // pred_fallthru
        _
      %p243 = scmp.lt.s32.totalorder %s16, 2
      // Predicated region
      $region37: #{tpu_custom_call.1} parent=5 // pred_check
        %p244 = pneg %p243
      $region38: #{tpu_custom_call.1} parent=5 // pred_check_branch
        %246 = sbr.rel (%p244) target = $region40
      $region39: #{tpu_custom_call.1} parent=5 // pred_region
        // Predicated region
        $region41: #{tpu_custom_call.1} parent=39 // pred_check
          %p247 = pneg %p50
        $region42: #{tpu_custom_call.1} parent=39 // pred_check_branch
          %249 = sbr.rel (%p247) target = $region44
        $region43: #{tpu_custom_call.1} parent=39 // pred_region
          %s250 = smul.u32 2, %s24
          %p251 = scmp.lt.s32.totalorder %s23, 1
          %s252 = scalar_select %p251, %s23, 1
          %p253 = scmp.lt.s32.totalorder %s250, 1
          %s254 = scalar_select %p253, %s250, 1
          %s255 = smul.addr %s252, 2
          %s256 = sadd.s32 %s254, %s255
          %s257 = smul.addr %s256, 4
          %s258 = scalar_lea.vmem %s0, %s257
          %s259 = smul.u32 2, %s24
        $region44: #{tpu_custom_call.1} parent=39 // pred_fallthru
          _
      $region40: #{tpu_custom_call.1} parent=5 // pred_fallthru
        _
      %p260 = scmp.le.s32.totalorder 1, %s16
      %p261 = scmp.lt.s32.totalorder %s16, 3
      %p262 = pnand %p260, %p261
      %p263 = pneg %p262
      // Predicated region
      $region45: #{tpu_custom_call.1} parent=5 // pred_check
        _
      $region46: #{tpu_custom_call.1} parent=5 // pred_check_branch
        %265 = sbr.rel (%p262) target = $region48
      $region47: #{tpu_custom_call.1} parent=5 // pred_region
        %s266 = ssub.s32 %s16, 1
        %s267 = smul.u32 2, %s26
        %p268 = scmp.lt.s32.totalorder %s25, 1
        %s269 = scalar_select %p268, %s25, 1
        %p270 = scmp.lt.s32.totalorder %s267, 1
        %s271 = scalar_select %p270, %s267, 1
        %s272 = smul.addr %s269, 2
        %s273 = sadd.s32 %s271, %s272
        %s274 = smul.addr %s273, 4
        %s275 = scalar_lea.vmem %s0, %s274
        %p276 = pneg %p56
        %p277 = pneg %p53
        %p278 = pneg %p77
        %p279 = pneg %p74
        %p280 = pneg %p98
        %p281 = pneg %p95
        %p282 = pneg %p119
        %p283 = pneg %p116
        %p284 = pneg %p140
        %p285 = pneg %p137
        %p286 = pneg %p161
        %p287 = pneg %p158
        %p288 = pneg %p182
        %p289 = pneg %p179
        %p290 = pneg %p210
        %p291 = pneg %p207
        %s292 = sand.u32 %s197, 1
        %s293 = scalar_lea.sflag [#allocation3], %s292
        %s294 = sand.u32 %s197, 1
        %s295 = smul.addr %s294, 16
        %s296 = scalar_lea.vmem [#allocation2], %s295
        %s297 = smul.u32 2, %s26
        %p298 = scmp.lt.s32.totalorder %s25, 1
        %s299 = scalar_select %p298, %s25, 1
        %p300 = scmp.lt.s32.totalorder %s297, 1
        %s301 = scalar_select %p300, %s297, 1
        %s302 = smul.addr %s299, 2
        %s303 = sadd.s32 %s301, %s302
        %s304 = smul.addr %s303, 4
        %s305 = scalar_lea.vmem %s0, %s304
        %s306 = smul.u32 2, %s26
        %s307 = smul.u32 2, %s26
        %v308 = vld [vmem:[%s1] sm:$0xff]
        %v309 = vld [vmem:[%s1 + $0x8] sm:$0xff]
        %v310 = vld [vmem:[%s1 + $0x10] sm:$0xff]
        %v311 = vld [vmem:[%s1 + $0x18] sm:$0xff]
        %v312 = vld [vmem:[%s305] sm:$0xff]
        %v313 = vld [vmem:[%s2] sm:$0xff]
        %v314 = vld [vmem:[%s2 + $0x8] sm:$0xff]
        %v315 = vld [vmem:[%s2 + $0x10] sm:$0xff]
        %v316 = vld [vmem:[%s2 + $0x18] sm:$0xff]
        %318 = vset.pattern.permute.xlu0 0
        %319 = vperm.xlu0 %318, %v313
        %v320 = vpop.permute.xlu0 %319
        %323 = vset.pattern.permute.xlu0 0
        %324 = vperm.xlu0 %323, %v314
        %v325 = vpop.permute.xlu0 %324
        %328 = vset.pattern.permute.xlu0 0
        %329 = vperm.xlu0 %328, %v315
        %v330 = vpop.permute.xlu0 %329
        %333 = vset.pattern.permute.xlu0 0
        %334 = vperm.xlu0 %333, %v316
        %v335 = vpop.permute.xlu0 %334
        %338 = vst [vmem:[#allocation1] ss:$2 sm:$0xff] %v312
        %v339 = vld.sshfl [vmem:[#allocation1] sm:$0xff pattern:$0x75316420]
        %v340 = vld.sshfl [vmem:[#allocation1 + $0x8] sm:$0xff pattern:$0x75316420]
        %vm341 = vcmask 31744
        %v343 = vsel %vm341, %v308, 0
        %v346 = vsel %vm341, %v309, 0
        %v349 = vsel %vm341, %v310, 0
        %v352 = vsel %vm341, %v311, 0
        %vm354 = vcmask 1043456
        %v355 = vsel %vm354, %v339, 0
        %v357 = vsel %vm354, %v340, 0
        %359 = vmatpush.msra.mxu0 0.0
        %360 = vmatpush.msra.mxu0 0.0
        %361 = vmatpush.msra.mxu0 0.0
        %362 = vmatpush.msra.mxu0 0.0
        %363 = vmatpush.msra.mxu0 0.0
        %364 = vmatpush.msra.mxu0 0.0
        %365 = vmatpush.msra.mxu0 0.0
        %366 = vmatpush.msra.mxu0 0.0
        %367 = vmatpush.msra.mxu0 0.0
        %368 = vmatpush.msra.mxu0 0.0
        %369 = vmatpush.msra.mxu0 0.0
        %370 = vmatpush.msra.mxu0 0.0
        %371 = vmatpush.msra.mxu0 0.0
        %372 = vmatpush.msra.mxu0 0.0
        %373 = vmatpush.msra.mxu0 0.0
        %v374 = vand.u32 %v355, 4294901760
        %375 = vmatpush.msra.mxu0 %v374
        %v376 = vand.u32 %v343, 4294901760
        %v377 = vsub.f32 %v343, %v376
        %v378 = vand.u32 %v377, 4294901760
        %v379 = vsub.f32 %v377, %v378
        %v380 = vand.u32 %v379, 4294901760
        %381 = vmatmul.f32.gmra.mxu0 %v380
        %v382 = vpop.f32.mrf.mxu0
        %v383 = vadd.f32 %v320, %v382
        %v384 = vand.u32 %v346, 4294901760
        %v385 = vsub.f32 %v346, %v384
        %v386 = vand.u32 %v385, 4294901760
        %v387 = vsub.f32 %v385, %v386
        %v388 = vand.u32 %v387, 4294901760
        %389 = vmatmul.f32.gmra.mxu0 %v388
        %v390 = vpop.f32.mrf.mxu0
        %v391 = vadd.f32 %v325, %v390
        %v392 = vand.u32 %v349, 4294901760
        %v393 = vsub.f32 %v349, %v392
        %v394 = vand.u32 %v393, 4294901760
        %v395 = vsub.f32 %v393, %v394
        %v396 = vand.u32 %v395, 4294901760
        %397 = vmatmul.f32.gmra.mxu0 %v396
        %v398 = vpop.f32.mrf.mxu0
        %v399 = vadd.f32 %v330, %v398
        %v400 = vand.u32 %v352, 4294901760
        %v401 = vsub.f32 %v352, %v400
        %v402 = vand.u32 %v401, 4294901760
        %v403 = vsub.f32 %v401, %v402
        %v404 = vand.u32 %v403, 4294901760
        %405 = vmatmul.f32.gmra.mxu0 %v404
        %v406 = vpop.f32.mrf.mxu0
        %v407 = vadd.f32 %v335, %v406
        %408 = vdwg.mxu0
        %409 = vmatpush.msra.mxu0 0.0
        %410 = vmatpush.msra.mxu0 0.0
        %411 = vmatpush.msra.mxu0 0.0
        %412 = vmatpush.msra.mxu0 0.0
        %413 = vmatpush.msra.mxu0 0.0
        %414 = vmatpush.msra.mxu0 0.0
        %415 = vmatpush.msra.mxu0 0.0
        %416 = vmatpush.msra.mxu0 0.0
        %417 = vmatpush.msra.mxu0 0.0
        %418 = vmatpush.msra.mxu0 0.0
        %419 = vmatpush.msra.mxu0 0.0
        %420 = vmatpush.msra.mxu0 0.0
        %421 = vmatpush.msra.mxu0 0.0
        %422 = vmatpush.msra.mxu0 0.0
        %423 = vmatpush.msra.mxu0 0.0
        %v424 = vand.u32 %v355, 4294901760
        %v425 = vsub.f32 %v355, %v424
        %v426 = vand.u32 %v425, 4294901760
        %v427 = vsub.f32 %v425, %v426
        %v428 = vand.u32 %v427, 4294901760
        %429 = vmatpush.msra.mxu0 %v428
        %v430 = vand.u32 %v343, 4294901760
        %431 = vmatmul.f32.gmra.mxu0 %v430
        %v432 = vpop.f32.mrf.mxu0
        %v433 = vadd.f32 %v383, %v432
        %v434 = vand.u32 %v346, 4294901760
        %435 = vmatmul.f32.gmra.mxu0 %v434
        %v436 = vpop.f32.mrf.mxu0
        %v437 = vadd.f32 %v391, %v436
        %v438 = vand.u32 %v349, 4294901760
        %439 = vmatmul.f32.gmra.mxu0 %v438
        %v440 = vpop.f32.mrf.mxu0
        %v441 = vadd.f32 %v399, %v440
        %v442 = vand.u32 %v352, 4294901760
        %443 = vmatmul.f32.gmra.mxu0 %v442
        %v444 = vpop.f32.mrf.mxu0
        %v445 = vadd.f32 %v407, %v444
        %446 = vdwg.mxu0
        %447 = vmatpush.msra.mxu0 0.0
        %448 = vmatpush.msra.mxu0 0.0
        %449 = vmatpush.msra.mxu0 0.0
        %450 = vmatpush.msra.mxu0 0.0
        %451 = vmatpush.msra.mxu0 0.0
        %452 = vmatpush.msra.mxu0 0.0
        %453 = vmatpush.msra.mxu0 0.0
        %454 = vmatpush.msra.mxu0 0.0
        %455 = vmatpush.msra.mxu0 0.0
        %456 = vmatpush.msra.mxu0 0.0
        %457 = vmatpush.msra.mxu0 0.0
        %458 = vmatpush.msra.mxu0 0.0
        %459 = vmatpush.msra.mxu0 0.0
        %460 = vmatpush.msra.mxu0 0.0
        %461 = vmatpush.msra.mxu0 0.0
        %v462 = vand.u32 %v355, 4294901760
        %v463 = vsub.f32 %v355, %v462
        %464 = vmatpush.msra.mxu0 %v463
        %v465 = vand.u32 %v343, 4294901760
        %v466 = vsub.f32 %v343, %v465
        %467 = vmatmul.f32.gmra.mxu0 %v466
        %v468 = vpop.f32.mrf.mxu0
        %v469 = vadd.f32 %v433, %v468
        %v470 = vand.u32 %v346, 4294901760
        %v471 = vsub.f32 %v346, %v470
        %472 = vmatmul.f32.gmra.mxu0 %v471
        %v473 = vpop.f32.mrf.mxu0
        %v474 = vadd.f32 %v437, %v473
        %v475 = vand.u32 %v349, 4294901760
        %v476 = vsub.f32 %v349, %v475
        %477 = vmatmul.f32.gmra.mxu0 %v476
        %v478 = vpop.f32.mrf.mxu0
        %v479 = vadd.f32 %v441, %v478
        %v480 = vand.u32 %v352, 4294901760
        %v481 = vsub.f32 %v352, %v480
        %482 = vmatmul.f32.gmra.mxu0 %v481
        %v483 = vpop.f32.mrf.mxu0
        %v484 = vadd.f32 %v445, %v483
        %485 = vdwg.mxu0
        %486 = vmatpush.msra.mxu0 0.0
        %487 = vmatpush.msra.mxu0 0.0
        %488 = vmatpush.msra.mxu0 0.0
        %489 = vmatpush.msra.mxu0 0.0
        %490 = vmatpush.msra.mxu0 0.0
        %491 = vmatpush.msra.mxu0 0.0
        %492 = vmatpush.msra.mxu0 0.0
        %493 = vmatpush.msra.mxu0 0.0
        %494 = vmatpush.msra.mxu0 0.0
        %495 = vmatpush.msra.mxu0 0.0
        %496 = vmatpush.msra.mxu0 0.0
        %497 = vmatpush.msra.mxu0 0.0
        %498 = vmatpush.msra.mxu0 0.0
        %499 = vmatpush.msra.mxu0 0.0
        %500 = vmatpush.msra.mxu0 0.0
        %v501 = vand.u32 %v355, 4294901760
        %502 = vmatpush.msra.mxu0 %v501
        %v503 = vand.u32 %v343, 4294901760
        %v504 = vsub.f32 %v343, %v503
        %v505 = vand.u32 %v504, 4294901760
        %506 = vmatmul.f32.gmra.mxu0 %v505
        %v507 = vpop.f32.mrf.mxu0
        %v508 = vadd.f32 %v469, %v507
        %v509 = vand.u32 %v346, 4294901760
        %v510 = vsub.f32 %v346, %v509
        %v511 = vand.u32 %v510, 4294901760
        %512 = vmatmul.f32.gmra.mxu0 %v511
        %v513 = vpop.f32.mrf.mxu0
        %v514 = vadd.f32 %v474, %v513
        %v515 = vand.u32 %v349, 4294901760
        %v516 = vsub.f32 %v349, %v515
        %v517 = vand.u32 %v516, 4294901760
        %518 = vmatmul.f32.gmra.mxu0 %v517
        %v519 = vpop.f32.mrf.mxu0
        %v520 = vadd.f32 %v479, %v519
        %v521 = vand.u32 %v352, 4294901760
        %v522 = vsub.f32 %v352, %v521
        %v523 = vand.u32 %v522, 4294901760
        %524 = vmatmul.f32.gmra.mxu0 %v523
        %v525 = vpop.f32.mrf.mxu0
        %v526 = vadd.f32 %v484, %v525
        %527 = vdwg.mxu0
        %528 = vmatpush.msra.mxu0 0.0
        %529 = vmatpush.msra.mxu0 0.0
        %530 = vmatpush.msra.mxu0 0.0
        %531 = vmatpush.msra.mxu0 0.0
        %532 = vmatpush.msra.mxu0 0.0
        %533 = vmatpush.msra.mxu0 0.0
        %534 = vmatpush.msra.mxu0 0.0
        %535 = vmatpush.msra.mxu0 0.0
        %536 = vmatpush.msra.mxu0 0.0
        %537 = vmatpush.msra.mxu0 0.0
        %538 = vmatpush.msra.mxu0 0.0
        %539 = vmatpush.msra.mxu0 0.0
        %540 = vmatpush.msra.mxu0 0.0
        %541 = vmatpush.msra.mxu0 0.0
        %542 = vmatpush.msra.mxu0 0.0
        %v543 = vand.u32 %v355, 4294901760
        %v544 = vsub.f32 %v355, %v543
        %v545 = vand.u32 %v544, 4294901760
        %546 = vmatpush.msra.mxu0 %v545
        %v547 = vand.u32 %v343, 4294901760
        %548 = vmatmul.f32.gmra.mxu0 %v547
        %v549 = vpop.f32.mrf.mxu0
        %v550 = vadd.f32 %v508, %v549
        %v551 = vand.u32 %v346, 4294901760
        %552 = vmatmul.f32.gmra.mxu0 %v551
        %v553 = vpop.f32.mrf.mxu0
        %v554 = vadd.f32 %v514, %v553
        %v555 = vand.u32 %v349, 4294901760
        %556 = vmatmul.f32.gmra.mxu0 %v555
        %v557 = vpop.f32.mrf.mxu0
        %v558 = vadd.f32 %v520, %v557
        %v559 = vand.u32 %v352, 4294901760
        %560 = vmatmul.f32.gmra.mxu0 %v559
        %v561 = vpop.f32.mrf.mxu0
        %v562 = vadd.f32 %v526, %v561
        %563 = vdwg.mxu0
        %564 = vmatpush.msra.mxu0 0.0
        %565 = vmatpush.msra.mxu0 0.0
        %566 = vmatpush.msra.mxu0 0.0
        %567 = vmatpush.msra.mxu0 0.0
        %568 = vmatpush.msra.mxu0 0.0
        %569 = vmatpush.msra.mxu0 0.0
        %570 = vmatpush.msra.mxu0 0.0
        %571 = vmatpush.msra.mxu0 0.0
        %572 = vmatpush.msra.mxu0 0.0
        %573 = vmatpush.msra.mxu0 0.0
        %574 = vmatpush.msra.mxu0 0.0
        %575 = vmatpush.msra.mxu0 0.0
        %576 = vmatpush.msra.mxu0 0.0
        %577 = vmatpush.msra.mxu0 0.0
        %578 = vmatpush.msra.mxu0 0.0
        %v579 = vand.u32 %v355, 4294901760
        %580 = vmatpush.msra.mxu0 %v579
        %v581 = vand.u32 %v343, 4294901760
        %582 = vmatmul.f32.gmra.mxu0 %v581
        %v583 = vpop.f32.mrf.mxu0
        %v584 = vadd.f32 %v550, %v583
        %v585 = vand.u32 %v346, 4294901760
        %586 = vmatmul.f32.gmra.mxu0 %v585
        %v587 = vpop.f32.mrf.mxu0
        %v588 = vadd.f32 %v554, %v587
        %v589 = vand.u32 %v349, 4294901760
        %590 = vmatmul.f32.gmra.mxu0 %v589
        %v591 = vpop.f32.mrf.mxu0
        %v592 = vadd.f32 %v558, %v591
        %v593 = vand.u32 %v352, 4294901760
        %594 = vmatmul.f32.gmra.mxu0 %v593
        %v595 = vpop.f32.mrf.mxu0
        %v596 = vadd.f32 %v562, %v595
        %597 = vdwg.mxu0
        %598 = vmatpush.msra.mxu0 0.0
        %599 = vmatpush.msra.mxu0 0.0
        %600 = vmatpush.msra.mxu0 0.0
        %601 = vmatpush.msra.mxu0 0.0
        %602 = vmatpush.msra.mxu0 0.0
        %603 = vmatpush.msra.mxu0 0.0
        %604 = vmatpush.msra.mxu0 0.0
        %605 = vmatpush.msra.mxu0 0.0
        %606 = vmatpush.msra.mxu0 0.0
        %607 = vmatpush.msra.mxu0 0.0
        %608 = vmatpush.msra.mxu0 0.0
        %609 = vmatpush.msra.mxu0 0.0
        %610 = vmatpush.msra.mxu0 0.0
        %611 = vmatpush.msra.mxu0 0.0
        %612 = vmatpush.msra.mxu0 0.0
        %v613 = vand.u32 %v357, 4294901760
        %614 = vmatpush.msra.mxu0 %v613
        %v615 = vand.u32 %v343, 4294901760
        %v616 = vsub.f32 %v343, %v615
        %v617 = vand.u32 %v616, 4294901760
        %v618 = vsub.f32 %v616, %v617
        %v619 = vand.u32 %v618, 4294901760
        %620 = vmatmul.f32.gmra.mxu0 %v619
        %v621 = vpop.f32.mrf.mxu0
        %v622 = vadd.f32 %v320, %v621
        %v623 = vand.u32 %v346, 4294901760
        %v624 = vsub.f32 %v346, %v623
        %v625 = vand.u32 %v624, 4294901760
        %v626 = vsub.f32 %v624, %v625
        %v627 = vand.u32 %v626, 4294901760
        %628 = vmatmul.f32.gmra.mxu0 %v627
        %v629 = vpop.f32.mrf.mxu0
        %v630 = vadd.f32 %v325, %v629
        %v631 = vand.u32 %v349, 4294901760
        %v632 = vsub.f32 %v349, %v631
        %v633 = vand.u32 %v632, 4294901760
        %v634 = vsub.f32 %v632, %v633
        %v635 = vand.u32 %v634, 4294901760
        %636 = vmatmul.f32.gmra.mxu0 %v635
        %v637 = vpop.f32.mrf.mxu0
        %v638 = vadd.f32 %v330, %v637
        %v639 = vand.u32 %v352, 4294901760
        %v640 = vsub.f32 %v352, %v639
        %v641 = vand.u32 %v640, 4294901760
        %v642 = vsub.f32 %v640, %v641
        %v643 = vand.u32 %v642, 4294901760
        %644 = vmatmul.f32.gmra.mxu0 %v643
        %v645 = vpop.f32.mrf.mxu0
        %v646 = vadd.f32 %v335, %v645
        %647 = vdwg.mxu0
        %648 = vmatpush.msra.mxu0 0.0
        %649 = vmatpush.msra.mxu0 0.0
        %650 = vmatpush.msra.mxu0 0.0
        %651 = vmatpush.msra.mxu0 0.0
        %652 = vmatpush.msra.mxu0 0.0
        %653 = vmatpush.msra.mxu0 0.0
        %654 = vmatpush.msra.mxu0 0.0
        %655 = vmatpush.msra.mxu0 0.0
        %656 = vmatpush.msra.mxu0 0.0
        %657 = vmatpush.msra.mxu0 0.0
        %658 = vmatpush.msra.mxu0 0.0
        %659 = vmatpush.msra.mxu0 0.0
        %660 = vmatpush.msra.mxu0 0.0
        %661 = vmatpush.msra.mxu0 0.0
        %662 = vmatpush.msra.mxu0 0.0
        %v663 = vand.u32 %v357, 4294901760
        %v664 = vsub.f32 %v357, %v663
        %v665 = vand.u32 %v664, 4294901760
        %v666 = vsub.f32 %v664, %v665
        %v667 = vand.u32 %v666, 4294901760
        %668 = vmatpush.msra.mxu0 %v667
        %v669 = vand.u32 %v343, 4294901760
        %670 = vmatmul.f32.gmra.mxu0 %v669
        %v671 = vpop.f32.mrf.mxu0
        %v672 = vadd.f32 %v622, %v671
        %v673 = vand.u32 %v346, 4294901760
        %674 = vmatmul.f32.gmra.mxu0 %v673
        %v675 = vpop.f32.mrf.mxu0
        %v676 = vadd.f32 %v630, %v675
        %v677 = vand.u32 %v349, 4294901760
        %678 = vmatmul.f32.gmra.mxu0 %v677
        %v679 = vpop.f32.mrf.mxu0
        %v680 = vadd.f32 %v638, %v679
        %v681 = vand.u32 %v352, 4294901760
        %682 = vmatmul.f32.gmra.mxu0 %v681
        %v683 = vpop.f32.mrf.mxu0
        %v684 = vadd.f32 %v646, %v683
        %685 = vdwg.mxu0
        %686 = vmatpush.msra.mxu0 0.0
        %687 = vmatpush.msra.mxu0 0.0
        %688 = vmatpush.msra.mxu0 0.0
        %689 = vmatpush.msra.mxu0 0.0
        %690 = vmatpush.msra.mxu0 0.0
        %691 = vmatpush.msra.mxu0 0.0
        %692 = vmatpush.msra.mxu0 0.0
        %693 = vmatpush.msra.mxu0 0.0
        %694 = vmatpush.msra.mxu0 0.0
        %695 = vmatpush.msra.mxu0 0.0
        %696 = vmatpush.msra.mxu0 0.0
        %697 = vmatpush.msra.mxu0 0.0
        %698 = vmatpush.msra.mxu0 0.0
        %699 = vmatpush.msra.mxu0 0.0
        %700 = vmatpush.msra.mxu0 0.0
        %v701 = vand.u32 %v357, 4294901760
        %v702 = vsub.f32 %v357, %v701
        %703 = vmatpush.msra.mxu0 %v702
        %v704 = vand.u32 %v343, 4294901760
        %v705 = vsub.f32 %v343, %v704
        %706 = vmatmul.f32.gmra.mxu0 %v705
        %v707 = vpop.f32.mrf.mxu0
        %v708 = vadd.f32 %v672, %v707
        %v709 = vand.u32 %v346, 4294901760
        %v710 = vsub.f32 %v346, %v709
        %711 = vmatmul.f32.gmra.mxu0 %v710
        %v712 = vpop.f32.mrf.mxu0
        %v713 = vadd.f32 %v676, %v712
        %v714 = vand.u32 %v349, 4294901760
        %v715 = vsub.f32 %v349, %v714
        %716 = vmatmul.f32.gmra.mxu0 %v715
        %v717 = vpop.f32.mrf.mxu0
        %v718 = vadd.f32 %v680, %v717
        %v719 = vand.u32 %v352, 4294901760
        %v720 = vsub.f32 %v352, %v719
        %721 = vmatmul.f32.gmra.mxu0 %v720
        %v722 = vpop.f32.mrf.mxu0
        %v723 = vadd.f32 %v684, %v722
        %724 = vdwg.mxu0
        %725 = vmatpush.msra.mxu0 0.0
        %726 = vmatpush.msra.mxu0 0.0
        %727 = vmatpush.msra.mxu0 0.0
        %728 = vmatpush.msra.mxu0 0.0
        %729 = vmatpush.msra.mxu0 0.0
        %730 = vmatpush.msra.mxu0 0.0
        %731 = vmatpush.msra.mxu0 0.0
        %732 = vmatpush.msra.mxu0 0.0
        %733 = vmatpush.msra.mxu0 0.0
        %734 = vmatpush.msra.mxu0 0.0
        %735 = vmatpush.msra.mxu0 0.0
        %736 = vmatpush.msra.mxu0 0.0
        %737 = vmatpush.msra.mxu0 0.0
        %738 = vmatpush.msra.mxu0 0.0
        %739 = vmatpush.msra.mxu0 0.0
        %v740 = vand.u32 %v357, 4294901760
        %741 = vmatpush.msra.mxu0 %v740
        %v742 = vand.u32 %v343, 4294901760
        %v743 = vsub.f32 %v343, %v742
        %v744 = vand.u32 %v743, 4294901760
        %745 = vmatmul.f32.gmra.mxu0 %v744
        %v746 = vpop.f32.mrf.mxu0
        %v747 = vadd.f32 %v708, %v746
        %v748 = vand.u32 %v346, 4294901760
        %v749 = vsub.f32 %v346, %v748
        %v750 = vand.u32 %v749, 4294901760
        %751 = vmatmul.f32.gmra.mxu0 %v750
        %v752 = vpop.f32.mrf.mxu0
        %v753 = vadd.f32 %v713, %v752
        %v754 = vand.u32 %v349, 4294901760
        %v755 = vsub.f32 %v349, %v754
        %v756 = vand.u32 %v755, 4294901760
        %757 = vmatmul.f32.gmra.mxu0 %v756
        %v758 = vpop.f32.mrf.mxu0
        %v759 = vadd.f32 %v718, %v758
        %v760 = vand.u32 %v352, 4294901760
        %v761 = vsub.f32 %v352, %v760
        %v762 = vand.u32 %v761, 4294901760
        %763 = vmatmul.f32.gmra.mxu0 %v762
        %v764 = vpop.f32.mrf.mxu0
        %v765 = vadd.f32 %v723, %v764
        %766 = vdwg.mxu0
        %767 = vmatpush.msra.mxu0 0.0
        %768 = vmatpush.msra.mxu0 0.0
        %769 = vmatpush.msra.mxu0 0.0
        %770 = vmatpush.msra.mxu0 0.0
        %771 = vmatpush.msra.mxu0 0.0
        %772 = vmatpush.msra.mxu0 0.0
        %773 = vmatpush.msra.mxu0 0.0
        %774 = vmatpush.msra.mxu0 0.0
        %775 = vmatpush.msra.mxu0 0.0
        %776 = vmatpush.msra.mxu0 0.0
        %777 = vmatpush.msra.mxu0 0.0
        %778 = vmatpush.msra.mxu0 0.0
        %779 = vmatpush.msra.mxu0 0.0
        %780 = vmatpush.msra.mxu0 0.0
        %781 = vmatpush.msra.mxu0 0.0
        %v782 = vand.u32 %v357, 4294901760
        %v783 = vsub.f32 %v357, %v782
        %v784 = vand.u32 %v783, 4294901760
        %785 = vmatpush.msra.mxu0 %v784
        %v786 = vand.u32 %v343, 4294901760
        %787 = vmatmul.f32.gmra.mxu0 %v786
        %v788 = vpop.f32.mrf.mxu0
        %v789 = vadd.f32 %v747, %v788
        %v790 = vand.u32 %v346, 4294901760
        %791 = vmatmul.f32.gmra.mxu0 %v790
        %v792 = vpop.f32.mrf.mxu0
        %v793 = vadd.f32 %v753, %v792
        %v794 = vand.u32 %v349, 4294901760
        %795 = vmatmul.f32.gmra.mxu0 %v794
        %v796 = vpop.f32.mrf.mxu0
        %v797 = vadd.f32 %v759, %v796
        %v798 = vand.u32 %v352, 4294901760
        %799 = vmatmul.f32.gmra.mxu0 %v798
        %v800 = vpop.f32.mrf.mxu0
        %v801 = vadd.f32 %v765, %v800
        %802 = vdwg.mxu0
        %803 = vmatpush.msra.mxu0 0.0
        %804 = vmatpush.msra.mxu0 0.0
        %805 = vmatpush.msra.mxu0 0.0
        %806 = vmatpush.msra.mxu0 0.0
        %807 = vmatpush.msra.mxu0 0.0
        %808 = vmatpush.msra.mxu0 0.0
        %809 = vmatpush.msra.mxu0 0.0
        %810 = vmatpush.msra.mxu0 0.0
        %811 = vmatpush.msra.mxu0 0.0
        %812 = vmatpush.msra.mxu0 0.0
        %813 = vmatpush.msra.mxu0 0.0
        %814 = vmatpush.msra.mxu0 0.0
        %815 = vmatpush.msra.mxu0 0.0
        %816 = vmatpush.msra.mxu0 0.0
        %817 = vmatpush.msra.mxu0 0.0
        %v818 = vand.u32 %v357, 4294901760
        %819 = vmatpush.msra.mxu0 %v818
        %v820 = vand.u32 %v343, 4294901760
        %821 = vmatmul.f32.gmra.mxu0 %v820
        %v822 = vpop.f32.mrf.mxu0
        %v823 = vadd.f32 %v789, %v822
        %v824 = vand.u32 %v346, 4294901760
        %825 = vmatmul.f32.gmra.mxu0 %v824
        %v826 = vpop.f32.mrf.mxu0
        %v827 = vadd.f32 %v793, %v826
        %v828 = vand.u32 %v349, 4294901760
        %829 = vmatmul.f32.gmra.mxu0 %v828
        %v830 = vpop.f32.mrf.mxu0
        %v831 = vadd.f32 %v797, %v830
        %v832 = vand.u32 %v352, 4294901760
        %833 = vmatmul.f32.gmra.mxu0 %v832
        %v834 = vpop.f32.mrf.mxu0
        %v835 = vadd.f32 %v801, %v834
        %836 = vdwg.mxu0
        %v837 = vmax.f32 %v584, 0.0
        %v838 = vmax.f32 %v823, 0.0
        %v839 = vmax.f32 %v588, 0.0
        %v840 = vmax.f32 %v827, 0.0
        %v841 = vmax.f32 %v592, 0.0
        %v842 = vmax.f32 %v831, 0.0
        %v843 = vmax.f32 %v596, 0.0
        %v844 = vmax.f32 %v835, 0.0
        %v845 = vld [vmem:[%s3] sm:$0xff]
        %v846 = vld [vmem:[%s3 + $0x8] sm:$0xff]
        %v847 = vld [vmem:[%s3 + $0x10] sm:$0xff]
        %v848 = vld [vmem:[%s3 + $0x18] sm:$0xff]
        %v849 = vld [vmem:[%s4] sm:$0xff]
        %v850 = vld [vmem:[%s4 + $0x8] sm:$0xff]
        %v851 = vld [vmem:[%s4 + $0x10] sm:$0xff]
        %v852 = vld [vmem:[%s4 + $0x18] sm:$0xff]
        %854 = vset.pattern.permute.xlu0 0
        %855 = vperm.xlu0 %854, %v849
        %v856 = vpop.permute.xlu0 %855
        %859 = vset.pattern.permute.xlu0 0
        %860 = vperm.xlu0 %859, %v850
        %v861 = vpop.permute.xlu0 %860
        %864 = vset.pattern.permute.xlu0 0
        %865 = vperm.xlu0 %864, %v851
        %v866 = vpop.permute.xlu0 %865
        %869 = vset.pattern.permute.xlu0 0
        %870 = vperm.xlu0 %869, %v852
        %v871 = vpop.permute.xlu0 %870
        %vm873 = vcmask 261120
        %v875 = vsel %vm873, %v845, 0
        %v878 = vsel %vm873, %v846, 0
        %v881 = vsel %vm873, %v847, 0
        %v884 = vsel %vm873, %v848, 0
        %886 = vmatpush.msra.mxu0 0.0
        %887 = vmatpush.msra.mxu0 0.0
        %888 = vmatpush.msra.mxu0 0.0
        %889 = vmatpush.msra.mxu0 0.0
        %890 = vmatpush.msra.mxu0 0.0
        %891 = vmatpush.msra.mxu0 0.0
        %892 = vmatpush.msra.mxu0 0.0
        %893 = vmatpush.msra.mxu0 0.0
        %894 = vmatpush.msra.mxu0 0.0
        %895 = vmatpush.msra.mxu0 0.0
        %896 = vmatpush.msra.mxu0 0.0
        %897 = vmatpush.msra.mxu0 0.0
        %v898 = vand.u32 %v843, 4294901760
        %899 = vmatpush.msra.mxu0 %v898
        %v900 = vand.u32 %v841, 4294901760
        %901 = vmatpush.msra.mxu0 %v900
        %v902 = vand.u32 %v839, 4294901760
        %903 = vmatpush.msra.mxu0 %v902
        %v904 = vand.u32 %v837, 4294901760
        %905 = vmatpush.msra.mxu0 %v904
        %v906 = vand.u32 %v875, 4294901760
        %v907 = vsub.f32 %v875, %v906
        %v908 = vand.u32 %v907, 4294901760
        %v909 = vsub.f32 %v907, %v908
        %v910 = vand.u32 %v909, 4294901760
        %911 = vmatmul.f32.gmra.mxu0 %v910
        %v912 = vpop.f32.mrf.mxu0
        %v913 = vadd.f32 %v856, %v912
        %v914 = vand.u32 %v878, 4294901760
        %v915 = vsub.f32 %v878, %v914
        %v916 = vand.u32 %v915, 4294901760
        %v917 = vsub.f32 %v915, %v916
        %v918 = vand.u32 %v917, 4294901760
        %919 = vmatmul.f32.gmra.mxu0 %v918
        %v920 = vpop.f32.mrf.mxu0
        %v921 = vadd.f32 %v861, %v920
        %v922 = vand.u32 %v881, 4294901760
        %v923 = vsub.f32 %v881, %v922
        %v924 = vand.u32 %v923, 4294901760
        %v925 = vsub.f32 %v923, %v924
        %v926 = vand.u32 %v925, 4294901760
        %927 = vmatmul.f32.gmra.mxu0 %v926
        %v928 = vpop.f32.mrf.mxu0
        %v929 = vadd.f32 %v866, %v928
        %v930 = vand.u32 %v884, 4294901760
        %v931 = vsub.f32 %v884, %v930
        %v932 = vand.u32 %v931, 4294901760
        %v933 = vsub.f32 %v931, %v932
        %v934 = vand.u32 %v933, 4294901760
        %935 = vmatmul.f32.gmra.mxu0 %v934
        %v936 = vpop.f32.mrf.mxu0
        %v937 = vadd.f32 %v871, %v936
        %938 = vdwg.mxu0
        %939 = vmatpush.msra.mxu0 0.0
        %940 = vmatpush.msra.mxu0 0.0
        %941 = vmatpush.msra.mxu0 0.0
        %942 = vmatpush.msra.mxu0 0.0
        %943 = vmatpush.msra.mxu0 0.0
        %944 = vmatpush.msra.mxu0 0.0
        %945 = vmatpush.msra.mxu0 0.0
        %946 = vmatpush.msra.mxu0 0.0
        %947 = vmatpush.msra.mxu0 0.0
        %948 = vmatpush.msra.mxu0 0.0
        %949 = vmatpush.msra.mxu0 0.0
        %950 = vmatpush.msra.mxu0 0.0
        %v951 = vand.u32 %v843, 4294901760
        %v952 = vsub.f32 %v843, %v951
        %v953 = vand.u32 %v952, 4294901760
        %v954 = vsub.f32 %v952, %v953
        %v955 = vand.u32 %v954, 4294901760
        %956 = vmatpush.msra.mxu0 %v955
        %v957 = vand.u32 %v841, 4294901760
        %v958 = vsub.f32 %v841, %v957
        %v959 = vand.u32 %v958, 4294901760
        %v960 = vsub.f32 %v958, %v959
        %v961 = vand.u32 %v960, 4294901760
        %962 = vmatpush.msra.mxu0 %v961
        %v963 = vand.u32 %v839, 4294901760
        %v964 = vsub.f32 %v839, %v963
        %v965 = vand.u32 %v964, 4294901760
        %v966 = vsub.f32 %v964, %v965
        %v967 = vand.u32 %v966, 4294901760
        %968 = vmatpush.msra.mxu0 %v967
        %v969 = vand.u32 %v837, 4294901760
        %v970 = vsub.f32 %v837, %v969
        %v971 = vand.u32 %v970, 4294901760
        %v972 = vsub.f32 %v970, %v971
        %v973 = vand.u32 %v972, 4294901760
        %974 = vmatpush.msra.mxu0 %v973
        %v975 = vand.u32 %v875, 4294901760
        %976 = vmatmul.f32.gmra.mxu0 %v975
        %v977 = vpop.f32.mrf.mxu0
        %v978 = vadd.f32 %v913, %v977
        %v979 = vand.u32 %v878, 4294901760
        %980 = vmatmul.f32.gmra.mxu0 %v979
        %v981 = vpop.f32.mrf.mxu0
        %v982 = vadd.f32 %v921, %v981
        %v983 = vand.u32 %v881, 4294901760
        %984 = vmatmul.f32.gmra.mxu0 %v983
        %v985 = vpop.f32.mrf.mxu0
        %v986 = vadd.f32 %v929, %v985
        %v987 = vand.u32 %v884, 4294901760
        %988 = vmatmul.f32.gmra.mxu0 %v987
        %v989 = vpop.f32.mrf.mxu0
        %v990 = vadd.f32 %v937, %v989
        %991 = vdwg.mxu0
        %992 = vmatpush.msra.mxu0 0.0
        %993 = vmatpush.msra.mxu0 0.0
        %994 = vmatpush.msra.mxu0 0.0
        %995 = vmatpush.msra.mxu0 0.0
        %996 = vmatpush.msra.mxu0 0.0
        %997 = vmatpush.msra.mxu0 0.0
        %998 = vmatpush.msra.mxu0 0.0
        %999 = vmatpush.msra.mxu0 0.0
        %1000 = vmatpush.msra.mxu0 0.0
        %1001 = vmatpush.msra.mxu0 0.0
        %1002 = vmatpush.msra.mxu0 0.0
        %1003 = vmatpush.msra.mxu0 0.0
        %v1004 = vand.u32 %v843, 4294901760
        %v1005 = vsub.f32 %v843, %v1004
        %1006 = vmatpush.msra.mxu0 %v1005
        %v1007 = vand.u32 %v841, 4294901760
        %v1008 = vsub.f32 %v841, %v1007
        %1009 = vmatpush.msra.mxu0 %v1008
        %v1010 = vand.u32 %v839, 4294901760
        %v1011 = vsub.f32 %v839, %v1010
        %1012 = vmatpush.msra.mxu0 %v1011
        %v1013 = vand.u32 %v837, 4294901760
        %v1014 = vsub.f32 %v837, %v1013
        %1015 = vmatpush.msra.mxu0 %v1014
        %v1016 = vand.u32 %v875, 4294901760
        %v1017 = vsub.f32 %v875, %v1016
        %1018 = vmatmul.f32.gmra.mxu0 %v1017
        %v1019 = vpop.f32.mrf.mxu0
        %v1020 = vadd.f32 %v978, %v1019
        %v1021 = vand.u32 %v878, 4294901760
        %v1022 = vsub.f32 %v878, %v1021
        %1023 = vmatmul.f32.gmra.mxu0 %v1022
        %v1024 = vpop.f32.mrf.mxu0
        %v1025 = vadd.f32 %v982, %v1024
        %v1026 = vand.u32 %v881, 4294901760
        %v1027 = vsub.f32 %v881, %v1026
        %1028 = vmatmul.f32.gmra.mxu0 %v1027
        %v1029 = vpop.f32.mrf.mxu0
        %v1030 = vadd.f32 %v986, %v1029
        %v1031 = vand.u32 %v884, 4294901760
        %v1032 = vsub.f32 %v884, %v1031
        %1033 = vmatmul.f32.gmra.mxu0 %v1032
        %v1034 = vpop.f32.mrf.mxu0
        %v1035 = vadd.f32 %v990, %v1034
        %1036 = vdwg.mxu0
        %1037 = vmatpush.msra.mxu0 0.0
        %1038 = vmatpush.msra.mxu0 0.0
        %1039 = vmatpush.msra.mxu0 0.0
        %1040 = vmatpush.msra.mxu0 0.0
        %1041 = vmatpush.msra.mxu0 0.0
        %1042 = vmatpush.msra.mxu0 0.0
        %1043 = vmatpush.msra.mxu0 0.0
        %1044 = vmatpush.msra.mxu0 0.0
        %1045 = vmatpush.msra.mxu0 0.0
        %1046 = vmatpush.msra.mxu0 0.0
        %1047 = vmatpush.msra.mxu0 0.0
        %1048 = vmatpush.msra.mxu0 0.0
        %v1049 = vand.u32 %v843, 4294901760
        %1050 = vmatpush.msra.mxu0 %v1049
        %v1051 = vand.u32 %v841, 4294901760
        %1052 = vmatpush.msra.mxu0 %v1051
        %v1053 = vand.u32 %v839, 4294901760
        %1054 = vmatpush.msra.mxu0 %v1053
        %v1055 = vand.u32 %v837, 4294901760
        %1056 = vmatpush.msra.mxu0 %v1055
        %v1057 = vand.u32 %v875, 4294901760
        %v1058 = vsub.f32 %v875, %v1057
        %v1059 = vand.u32 %v1058, 4294901760
        %1060 = vmatmul.f32.gmra.mxu0 %v1059
        %v1061 = vpop.f32.mrf.mxu0
        %v1062 = vadd.f32 %v1020, %v1061
        %v1063 = vand.u32 %v878, 4294901760
        %v1064 = vsub.f32 %v878, %v1063
        %v1065 = vand.u32 %v1064, 4294901760
        %1066 = vmatmul.f32.gmra.mxu0 %v1065
        %v1067 = vpop.f32.mrf.mxu0
        %v1068 = vadd.f32 %v1025, %v1067
        %v1069 = vand.u32 %v881, 4294901760
        %v1070 = vsub.f32 %v881, %v1069
        %v1071 = vand.u32 %v1070, 4294901760
        %1072 = vmatmul.f32.gmra.mxu0 %v1071
        %v1073 = vpop.f32.mrf.mxu0
        %v1074 = vadd.f32 %v1030, %v1073
        %v1075 = vand.u32 %v884, 4294901760
        %v1076 = vsub.f32 %v884, %v1075
        %v1077 = vand.u32 %v1076, 4294901760
        %1078 = vmatmul.f32.gmra.mxu0 %v1077
        %v1079 = vpop.f32.mrf.mxu0
        %v1080 = vadd.f32 %v1035, %v1079
        %1081 = vdwg.mxu0
        %1082 = vmatpush.msra.mxu0 0.0
        %1083 = vmatpush.msra.mxu0 0.0
        %1084 = vmatpush.msra.mxu0 0.0
        %1085 = vmatpush.msra.mxu0 0.0
        %1086 = vmatpush.msra.mxu0 0.0
        %1087 = vmatpush.msra.mxu0 0.0
        %1088 = vmatpush.msra.mxu0 0.0
        %1089 = vmatpush.msra.mxu0 0.0
        %1090 = vmatpush.msra.mxu0 0.0
        %1091 = vmatpush.msra.mxu0 0.0
        %1092 = vmatpush.msra.mxu0 0.0
        %1093 = vmatpush.msra.mxu0 0.0
        %v1094 = vand.u32 %v843, 4294901760
        %v1095 = vsub.f32 %v843, %v1094
        %v1096 = vand.u32 %v1095, 4294901760
        %1097 = vmatpush.msra.mxu0 %v1096
        %v1098 = vand.u32 %v841, 4294901760
        %v1099 = vsub.f32 %v841, %v1098
        %v1100 = vand.u32 %v1099, 4294901760
        %1101 = vmatpush.msra.mxu0 %v1100
        %v1102 = vand.u32 %v839, 4294901760
        %v1103 = vsub.f32 %v839, %v1102
        %v1104 = vand.u32 %v1103, 4294901760
        %1105 = vmatpush.msra.mxu0 %v1104
        %v1106 = vand.u32 %v837, 4294901760
        %v1107 = vsub.f32 %v837, %v1106
        %v1108 = vand.u32 %v1107, 4294901760
        %1109 = vmatpush.msra.mxu0 %v1108
        %v1110 = vand.u32 %v875, 4294901760
        %1111 = vmatmul.f32.gmra.mxu0 %v1110
        %v1112 = vpop.f32.mrf.mxu0
        %v1113 = vadd.f32 %v1062, %v1112
        %v1114 = vand.u32 %v878, 4294901760
        %1115 = vmatmul.f32.gmra.mxu0 %v1114
        %v1116 = vpop.f32.mrf.mxu0
        %v1117 = vadd.f32 %v1068, %v1116
        %v1118 = vand.u32 %v881, 4294901760
        %1119 = vmatmul.f32.gmra.mxu0 %v1118
        %v1120 = vpop.f32.mrf.mxu0
        %v1121 = vadd.f32 %v1074, %v1120
        %v1122 = vand.u32 %v884, 4294901760
        %1123 = vmatmul.f32.gmra.mxu0 %v1122
        %v1124 = vpop.f32.mrf.mxu0
        %v1125 = vadd.f32 %v1080, %v1124
        %1126 = vdwg.mxu0
        %1127 = vmatpush.msra.mxu0 0.0
        %1128 = vmatpush.msra.mxu0 0.0
        %1129 = vmatpush.msra.mxu0 0.0
        %1130 = vmatpush.msra.mxu0 0.0
        %1131 = vmatpush.msra.mxu0 0.0
        %1132 = vmatpush.msra.mxu0 0.0
        %1133 = vmatpush.msra.mxu0 0.0
        %1134 = vmatpush.msra.mxu0 0.0
        %1135 = vmatpush.msra.mxu0 0.0
        %1136 = vmatpush.msra.mxu0 0.0
        %1137 = vmatpush.msra.mxu0 0.0
        %1138 = vmatpush.msra.mxu0 0.0
        %v1139 = vand.u32 %v843, 4294901760
        %1140 = vmatpush.msra.mxu0 %v1139
        %v1141 = vand.u32 %v841, 4294901760
        %1142 = vmatpush.msra.mxu0 %v1141
        %v1143 = vand.u32 %v839, 4294901760
        %1144 = vmatpush.msra.mxu0 %v1143
        %v1145 = vand.u32 %v837, 4294901760
        %1146 = vmatpush.msra.mxu0 %v1145
        %v1147 = vand.u32 %v875, 4294901760
        %1148 = vmatmul.f32.gmra.mxu0 %v1147
        %v1149 = vpop.f32.mrf.mxu0
        %v1150 = vadd.f32 %v1113, %v1149
        %v1151 = vand.u32 %v878, 4294901760
        %1152 = vmatmul.f32.gmra.mxu0 %v1151
        %v1153 = vpop.f32.mrf.mxu0
        %v1154 = vadd.f32 %v1117, %v1153
        %v1155 = vand.u32 %v881, 4294901760
        %1156 = vmatmul.f32.gmra.mxu0 %v1155
        %v1157 = vpop.f32.mrf.mxu0
        %v1158 = vadd.f32 %v1121, %v1157
        %v1159 = vand.u32 %v884, 4294901760
        %1160 = vmatmul.f32.gmra.mxu0 %v1159
        %v1161 = vpop.f32.mrf.mxu0
        %v1162 = vadd.f32 %v1125, %v1161
        %1163 = vdwg.mxu0
        %1164 = vmatpush.msra.mxu0 0.0
        %1165 = vmatpush.msra.mxu0 0.0
        %1166 = vmatpush.msra.mxu0 0.0
        %1167 = vmatpush.msra.mxu0 0.0
        %1168 = vmatpush.msra.mxu0 0.0
        %1169 = vmatpush.msra.mxu0 0.0
        %1170 = vmatpush.msra.mxu0 0.0
        %1171 = vmatpush.msra.mxu0 0.0
        %1172 = vmatpush.msra.mxu0 0.0
        %1173 = vmatpush.msra.mxu0 0.0
        %1174 = vmatpush.msra.mxu0 0.0
        %1175 = vmatpush.msra.mxu0 0.0
        %v1176 = vand.u32 %v844, 4294901760
        %1177 = vmatpush.msra.mxu0 %v1176
        %v1178 = vand.u32 %v842, 4294901760
        %1179 = vmatpush.msra.mxu0 %v1178
        %v1180 = vand.u32 %v840, 4294901760
        %1181 = vmatpush.msra.mxu0 %v1180
        %v1182 = vand.u32 %v838, 4294901760
        %1183 = vmatpush.msra.mxu0 %v1182
        %v1184 = vand.u32 %v875, 4294901760
        %v1185 = vsub.f32 %v875, %v1184
        %v1186 = vand.u32 %v1185, 4294901760
        %v1187 = vsub.f32 %v1185, %v1186
        %v1188 = vand.u32 %v1187, 4294901760
        %1189 = vmatmul.f32.gmra.mxu0 %v1188
        %v1190 = vpop.f32.mrf.mxu0
        %v1191 = vadd.f32 %v856, %v1190
        %v1192 = vand.u32 %v878, 4294901760
        %v1193 = vsub.f32 %v878, %v1192
        %v1194 = vand.u32 %v1193, 4294901760
        %v1195 = vsub.f32 %v1193, %v1194
        %v1196 = vand.u32 %v1195, 4294901760
        %1197 = vmatmul.f32.gmra.mxu0 %v1196
        %v1198 = vpop.f32.mrf.mxu0
        %v1199 = vadd.f32 %v861, %v1198
        %v1200 = vand.u32 %v881, 4294901760
        %v1201 = vsub.f32 %v881, %v1200
        %v1202 = vand.u32 %v1201, 4294901760
        %v1203 = vsub.f32 %v1201, %v1202
        %v1204 = vand.u32 %v1203, 4294901760
        %1205 = vmatmul.f32.gmra.mxu0 %v1204
        %v1206 = vpop.f32.mrf.mxu0
        %v1207 = vadd.f32 %v866, %v1206
        %v1208 = vand.u32 %v884, 4294901760
        %v1209 = vsub.f32 %v884, %v1208
        %v1210 = vand.u32 %v1209, 4294901760
        %v1211 = vsub.f32 %v1209, %v1210
        %v1212 = vand.u32 %v1211, 4294901760
        %1213 = vmatmul.f32.gmra.mxu0 %v1212
        %v1214 = vpop.f32.mrf.mxu0
        %v1215 = vadd.f32 %v871, %v1214
        %1216 = vdwg.mxu0
        %1217 = vmatpush.msra.mxu0 0.0
        %1218 = vmatpush.msra.mxu0 0.0
        %1219 = vmatpush.msra.mxu0 0.0
        %1220 = vmatpush.msra.mxu0 0.0
        %1221 = vmatpush.msra.mxu0 0.0
        %1222 = vmatpush.msra.mxu0 0.0
        %1223 = vmatpush.msra.mxu0 0.0
        %1224 = vmatpush.msra.mxu0 0.0
        %1225 = vmatpush.msra.mxu0 0.0
        %1226 = vmatpush.msra.mxu0 0.0
        %1227 = vmatpush.msra.mxu0 0.0
        %1228 = vmatpush.msra.mxu0 0.0
        %v1229 = vand.u32 %v844, 4294901760
        %v1230 = vsub.f32 %v844, %v1229
        %v1231 = vand.u32 %v1230, 4294901760
        %v1232 = vsub.f32 %v1230, %v1231
        %v1233 = vand.u32 %v1232, 4294901760
        %1234 = vmatpush.msra.mxu0 %v1233
        %v1235 = vand.u32 %v842, 4294901760
        %v1236 = vsub.f32 %v842, %v1235
        %v1237 = vand.u32 %v1236, 4294901760
        %v1238 = vsub.f32 %v1236, %v1237
        %v1239 = vand.u32 %v1238, 4294901760
        %1240 = vmatpush.msra.mxu0 %v1239
        %v1241 = vand.u32 %v840, 4294901760
        %v1242 = vsub.f32 %v840, %v1241
        %v1243 = vand.u32 %v1242, 4294901760
        %v1244 = vsub.f32 %v1242, %v1243
        %v1245 = vand.u32 %v1244, 4294901760
        %1246 = vmatpush.msra.mxu0 %v1245
        %v1247 = vand.u32 %v838, 4294901760
        %v1248 = vsub.f32 %v838, %v1247
        %v1249 = vand.u32 %v1248, 4294901760
        %v1250 = vsub.f32 %v1248, %v1249
        %v1251 = vand.u32 %v1250, 4294901760
        %1252 = vmatpush.msra.mxu0 %v1251
        %v1253 = vand.u32 %v875, 4294901760
        %1254 = vmatmul.f32.gmra.mxu0 %v1253
        %v1255 = vpop.f32.mrf.mxu0
        %v1256 = vadd.f32 %v1191, %v1255
        %v1257 = vand.u32 %v878, 4294901760
        %1258 = vmatmul.f32.gmra.mxu0 %v1257
        %v1259 = vpop.f32.mrf.mxu0
        %v1260 = vadd.f32 %v1199, %v1259
        %v1261 = vand.u32 %v881, 4294901760
        %1262 = vmatmul.f32.gmra.mxu0 %v1261
        %v1263 = vpop.f32.mrf.mxu0
        %v1264 = vadd.f32 %v1207, %v1263
        %v1265 = vand.u32 %v884, 4294901760
        %1266 = vmatmul.f32.gmra.mxu0 %v1265
        %v1267 = vpop.f32.mrf.mxu0
        %v1268 = vadd.f32 %v1215, %v1267
        %1269 = vdwg.mxu0
        %1270 = vmatpush.msra.mxu0 0.0
        %1271 = vmatpush.msra.mxu0 0.0
        %1272 = vmatpush.msra.mxu0 0.0
        %1273 = vmatpush.msra.mxu0 0.0
        %1274 = vmatpush.msra.mxu0 0.0
        %1275 = vmatpush.msra.mxu0 0.0
        %1276 = vmatpush.msra.mxu0 0.0
        %1277 = vmatpush.msra.mxu0 0.0
        %1278 = vmatpush.msra.mxu0 0.0
        %1279 = vmatpush.msra.mxu0 0.0
        %1280 = vmatpush.msra.mxu0 0.0
        %1281 = vmatpush.msra.mxu0 0.0
        %v1282 = vand.u32 %v844, 4294901760
        %v1283 = vsub.f32 %v844, %v1282
        %1284 = vmatpush.msra.mxu0 %v1283
        %v1285 = vand.u32 %v842, 4294901760
        %v1286 = vsub.f32 %v842, %v1285
        %1287 = vmatpush.msra.mxu0 %v1286
        %v1288 = vand.u32 %v840, 4294901760
        %v1289 = vsub.f32 %v840, %v1288
        %1290 = vmatpush.msra.mxu0 %v1289
        %v1291 = vand.u32 %v838, 4294901760
        %v1292 = vsub.f32 %v838, %v1291
        %1293 = vmatpush.msra.mxu0 %v1292
        %v1294 = vand.u32 %v875, 4294901760
        %v1295 = vsub.f32 %v875, %v1294
        %1296 = vmatmul.f32.gmra.mxu0 %v1295
        %v1297 = vpop.f32.mrf.mxu0
        %v1298 = vadd.f32 %v1256, %v1297
        %v1299 = vand.u32 %v878, 4294901760
        %v1300 = vsub.f32 %v878, %v1299
        %1301 = vmatmul.f32.gmra.mxu0 %v1300
        %v1302 = vpop.f32.mrf.mxu0
        %v1303 = vadd.f32 %v1260, %v1302
        %v1304 = vand.u32 %v881, 4294901760
        %v1305 = vsub.f32 %v881, %v1304
        %1306 = vmatmul.f32.gmra.mxu0 %v1305
        %v1307 = vpop.f32.mrf.mxu0
        %v1308 = vadd.f32 %v1264, %v1307
        %v1309 = vand.u32 %v884, 4294901760
        %v1310 = vsub.f32 %v884, %v1309
        %1311 = vmatmul.f32.gmra.mxu0 %v1310
        %v1312 = vpop.f32.mrf.mxu0
        %v1313 = vadd.f32 %v1268, %v1312
        %1314 = vdwg.mxu0
        %1315 = vmatpush.msra.mxu0 0.0
        %1316 = vmatpush.msra.mxu0 0.0
        %1317 = vmatpush.msra.mxu0 0.0
        %1318 = vmatpush.msra.mxu0 0.0
        %1319 = vmatpush.msra.mxu0 0.0
        %1320 = vmatpush.msra.mxu0 0.0
        %1321 = vmatpush.msra.mxu0 0.0
        %1322 = vmatpush.msra.mxu0 0.0
        %1323 = vmatpush.msra.mxu0 0.0
        %1324 = vmatpush.msra.mxu0 0.0
        %1325 = vmatpush.msra.mxu0 0.0
        %1326 = vmatpush.msra.mxu0 0.0
        %v1327 = vand.u32 %v844, 4294901760
        %1328 = vmatpush.msra.mxu0 %v1327
        %v1329 = vand.u32 %v842, 4294901760
        %1330 = vmatpush.msra.mxu0 %v1329
        %v1331 = vand.u32 %v840, 4294901760
        %1332 = vmatpush.msra.mxu0 %v1331
        %v1333 = vand.u32 %v838, 4294901760
        %1334 = vmatpush.msra.mxu0 %v1333
        %v1335 = vand.u32 %v875, 4294901760
        %v1336 = vsub.f32 %v875, %v1335
        %v1337 = vand.u32 %v1336, 4294901760
        %1338 = vmatmul.f32.gmra.mxu0 %v1337
        %v1339 = vpop.f32.mrf.mxu0
        %v1340 = vadd.f32 %v1298, %v1339
        %v1341 = vand.u32 %v878, 4294901760
        %v1342 = vsub.f32 %v878, %v1341
        %v1343 = vand.u32 %v1342, 4294901760
        %1344 = vmatmul.f32.gmra.mxu0 %v1343
        %v1345 = vpop.f32.mrf.mxu0
        %v1346 = vadd.f32 %v1303, %v1345
        %v1347 = vand.u32 %v881, 4294901760
        %v1348 = vsub.f32 %v881, %v1347
        %v1349 = vand.u32 %v1348, 4294901760
        %1350 = vmatmul.f32.gmra.mxu0 %v1349
        %v1351 = vpop.f32.mrf.mxu0
        %v1352 = vadd.f32 %v1308, %v1351
        %v1353 = vand.u32 %v884, 4294901760
        %v1354 = vsub.f32 %v884, %v1353
        %v1355 = vand.u32 %v1354, 4294901760
        %1356 = vmatmul.f32.gmra.mxu0 %v1355
        %v1357 = vpop.f32.mrf.mxu0
        %v1358 = vadd.f32 %v1313, %v1357
        %1359 = vdwg.mxu0
        %1360 = vmatpush.msra.mxu0 0.0
        %1361 = vmatpush.msra.mxu0 0.0
        %1362 = vmatpush.msra.mxu0 0.0
        %1363 = vmatpush.msra.mxu0 0.0
        %1364 = vmatpush.msra.mxu0 0.0
        %1365 = vmatpush.msra.mxu0 0.0
        %1366 = vmatpush.msra.mxu0 0.0
        %1367 = vmatpush.msra.mxu0 0.0
        %1368 = vmatpush.msra.mxu0 0.0
        %1369 = vmatpush.msra.mxu0 0.0
        %1370 = vmatpush.msra.mxu0 0.0
        %1371 = vmatpush.msra.mxu0 0.0
        %v1372 = vand.u32 %v844, 4294901760
        %v1373 = vsub.f32 %v844, %v1372
        %v1374 = vand.u32 %v1373, 4294901760
        %1375 = vmatpush.msra.mxu0 %v1374
        %v1376 = vand.u32 %v842, 4294901760
        %v1377 = vsub.f32 %v842, %v1376
        %v1378 = vand.u32 %v1377, 4294901760
        %1379 = vmatpush.msra.mxu0 %v1378
        %v1380 = vand.u32 %v840, 4294901760
        %v1381 = vsub.f32 %v840, %v1380
        %v1382 = vand.u32 %v1381, 4294901760
        %1383 = vmatpush.msra.mxu0 %v1382
        %v1384 = vand.u32 %v838, 4294901760
        %v1385 = vsub.f32 %v838, %v1384
        %v1386 = vand.u32 %v1385, 4294901760
        %1387 = vmatpush.msra.mxu0 %v1386
        %v1388 = vand.u32 %v875, 4294901760
        %1389 = vmatmul.f32.gmra.mxu0 %v1388
        %v1390 = vpop.f32.mrf.mxu0
        %v1391 = vadd.f32 %v1340, %v1390
        %v1392 = vand.u32 %v878, 4294901760
        %1393 = vmatmul.f32.gmra.mxu0 %v1392
        %v1394 = vpop.f32.mrf.mxu0
        %v1395 = vadd.f32 %v1346, %v1394
        %v1396 = vand.u32 %v881, 4294901760
        %1397 = vmatmul.f32.gmra.mxu0 %v1396
        %v1398 = vpop.f32.mrf.mxu0
        %v1399 = vadd.f32 %v1352, %v1398
        %v1400 = vand.u32 %v884, 4294901760
        %1401 = vmatmul.f32.gmra.mxu0 %v1400
        %v1402 = vpop.f32.mrf.mxu0
        %v1403 = vadd.f32 %v1358, %v1402
        %1404 = vdwg.mxu0
        %1405 = vmatpush.msra.mxu0 0.0
        %1406 = vmatpush.msra.mxu0 0.0
        %1407 = vmatpush.msra.mxu0 0.0
        %1408 = vmatpush.msra.mxu0 0.0
        %1409 = vmatpush.msra.mxu0 0.0
        %1410 = vmatpush.msra.mxu0 0.0
        %1411 = vmatpush.msra.mxu0 0.0
        %1412 = vmatpush.msra.mxu0 0.0
        %1413 = vmatpush.msra.mxu0 0.0
        %1414 = vmatpush.msra.mxu0 0.0
        %1415 = vmatpush.msra.mxu0 0.0
        %1416 = vmatpush.msra.mxu0 0.0
        %v1417 = vand.u32 %v844, 4294901760
        %1418 = vmatpush.msra.mxu0 %v1417
        %v1419 = vand.u32 %v842, 4294901760
        %1420 = vmatpush.msra.mxu0 %v1419
        %v1421 = vand.u32 %v840, 4294901760
        %1422 = vmatpush.msra.mxu0 %v1421
        %v1423 = vand.u32 %v838, 4294901760
        %1424 = vmatpush.msra.mxu0 %v1423
        %v1425 = vand.u32 %v875, 4294901760
        %1426 = vmatmul.f32.gmra.mxu0 %v1425
        %v1427 = vpop.f32.mrf.mxu0
        %v1428 = vadd.f32 %v1391, %v1427
        %v1429 = vand.u32 %v878, 4294901760
        %1430 = vmatmul.f32.gmra.mxu0 %v1429
        %v1431 = vpop.f32.mrf.mxu0
        %v1432 = vadd.f32 %v1395, %v1431
        %v1433 = vand.u32 %v881, 4294901760
        %1434 = vmatmul.f32.gmra.mxu0 %v1433
        %v1435 = vpop.f32.mrf.mxu0
        %v1436 = vadd.f32 %v1399, %v1435
        %v1437 = vand.u32 %v884, 4294901760
        %1438 = vmatmul.f32.gmra.mxu0 %v1437
        %v1439 = vpop.f32.mrf.mxu0
        %v1440 = vadd.f32 %v1403, %v1439
        %1441 = vdwg.mxu0
        %v1442 = vmax.f32 %v1150, 0.0
        %v1443 = vmax.f32 %v1428, 0.0
        %v1444 = vmax.f32 %v1154, 0.0
        %v1445 = vmax.f32 %v1432, 0.0
        %v1446 = vmax.f32 %v1158, 0.0
        %v1447 = vmax.f32 %v1436, 0.0
        %v1448 = vmax.f32 %v1162, 0.0
        %v1449 = vmax.f32 %v1440, 0.0
        %v1450 = vld [vmem:[%s5] sm:$0xff]
        %v1451 = vld [vmem:[%s6] sm:$0xff]
        %1453 = vset.pattern.permute.xlu0 0
        %1454 = vperm.xlu0 %1453, %v1451
        %v1455 = vpop.permute.xlu0 %1454
        %v1458 = vsel %vm873, %v1450, 0
        %1460 = vmatpush.msra.mxu0 0.0
        %1461 = vmatpush.msra.mxu0 0.0
        %1462 = vmatpush.msra.mxu0 0.0
        %1463 = vmatpush.msra.mxu0 0.0
        %1464 = vmatpush.msra.mxu0 0.0
        %1465 = vmatpush.msra.mxu0 0.0
        %1466 = vmatpush.msra.mxu0 0.0
        %1467 = vmatpush.msra.mxu0 0.0
        %1468 = vmatpush.msra.mxu0 0.0
        %1469 = vmatpush.msra.mxu0 0.0
        %1470 = vmatpush.msra.mxu0 0.0
        %1471 = vmatpush.msra.mxu0 0.0
        %v1472 = vand.u32 %v1448, 4294901760
        %1473 = vmatpush.msra.mxu0 %v1472
        %v1474 = vand.u32 %v1446, 4294901760
        %1475 = vmatpush.msra.mxu0 %v1474
        %v1476 = vand.u32 %v1444, 4294901760
        %1477 = vmatpush.msra.mxu0 %v1476
        %v1478 = vand.u32 %v1442, 4294901760
        %1479 = vmatpush.msra.mxu0 %v1478
        %v1480 = vand.u32 %v1458, 4294901760
        %v1481 = vsub.f32 %v1458, %v1480
        %v1482 = vand.u32 %v1481, 4294901760
        %v1483 = vsub.f32 %v1481, %v1482
        %v1484 = vand.u32 %v1483, 4294901760
        %1485 = vmatmul.f32.gmra.mxu0 %v1484
        %v1486 = vpop.f32.mrf.mxu0
        %v1487 = vadd.f32 %v1455, %v1486
        %1488 = vdwg.mxu0
        %1489 = vmatpush.msra.mxu0 0.0
        %1490 = vmatpush.msra.mxu0 0.0
        %1491 = vmatpush.msra.mxu0 0.0
        %1492 = vmatpush.msra.mxu0 0.0
        %1493 = vmatpush.msra.mxu0 0.0
        %1494 = vmatpush.msra.mxu0 0.0
        %1495 = vmatpush.msra.mxu0 0.0
        %1496 = vmatpush.msra.mxu0 0.0
        %1497 = vmatpush.msra.mxu0 0.0
        %1498 = vmatpush.msra.mxu0 0.0
        %1499 = vmatpush.msra.mxu0 0.0
        %1500 = vmatpush.msra.mxu0 0.0
        %v1501 = vand.u32 %v1448, 4294901760
        %v1502 = vsub.f32 %v1448, %v1501
        %v1503 = vand.u32 %v1502, 4294901760
        %v1504 = vsub.f32 %v1502, %v1503
        %v1505 = vand.u32 %v1504, 4294901760
        %1506 = vmatpush.msra.mxu0 %v1505
        %v1507 = vand.u32 %v1446, 4294901760
        %v1508 = vsub.f32 %v1446, %v1507
        %v1509 = vand.u32 %v1508, 4294901760
        %v1510 = vsub.f32 %v1508, %v1509
        %v1511 = vand.u32 %v1510, 4294901760
        %1512 = vmatpush.msra.mxu0 %v1511
        %v1513 = vand.u32 %v1444, 4294901760
        %v1514 = vsub.f32 %v1444, %v1513
        %v1515 = vand.u32 %v1514, 4294901760
        %v1516 = vsub.f32 %v1514, %v1515
        %v1517 = vand.u32 %v1516, 4294901760
        %1518 = vmatpush.msra.mxu0 %v1517
        %v1519 = vand.u32 %v1442, 4294901760
        %v1520 = vsub.f32 %v1442, %v1519
        %v1521 = vand.u32 %v1520, 4294901760
        %v1522 = vsub.f32 %v1520, %v1521
        %v1523 = vand.u32 %v1522, 4294901760
        %1524 = vmatpush.msra.mxu0 %v1523
        %v1525 = vand.u32 %v1458, 4294901760
        %1526 = vmatmul.f32.gmra.mxu0 %v1525
        %v1527 = vpop.f32.mrf.mxu0
        %v1528 = vadd.f32 %v1487, %v1527
        %1529 = vdwg.mxu0
        %1530 = vmatpush.msra.mxu0 0.0
        %1531 = vmatpush.msra.mxu0 0.0
        %1532 = vmatpush.msra.mxu0 0.0
        %1533 = vmatpush.msra.mxu0 0.0
        %1534 = vmatpush.msra.mxu0 0.0
        %1535 = vmatpush.msra.mxu0 0.0
        %1536 = vmatpush.msra.mxu0 0.0
        %1537 = vmatpush.msra.mxu0 0.0
        %1538 = vmatpush.msra.mxu0 0.0
        %1539 = vmatpush.msra.mxu0 0.0
        %1540 = vmatpush.msra.mxu0 0.0
        %1541 = vmatpush.msra.mxu0 0.0
        %v1542 = vand.u32 %v1448, 4294901760
        %v1543 = vsub.f32 %v1448, %v1542
        %1544 = vmatpush.msra.mxu0 %v1543
        %v1545 = vand.u32 %v1446, 4294901760
        %v1546 = vsub.f32 %v1446, %v1545
        %1547 = vmatpush.msra.mxu0 %v1546
        %v1548 = vand.u32 %v1444, 4294901760
        %v1549 = vsub.f32 %v1444, %v1548
        %1550 = vmatpush.msra.mxu0 %v1549
        %v1551 = vand.u32 %v1442, 4294901760
        %v1552 = vsub.f32 %v1442, %v1551
        %1553 = vmatpush.msra.mxu0 %v1552
        %v1554 = vand.u32 %v1458, 4294901760
        %v1555 = vsub.f32 %v1458, %v1554
        %1556 = vmatmul.f32.gmra.mxu0 %v1555
        %v1557 = vpop.f32.mrf.mxu0
        %v1558 = vadd.f32 %v1528, %v1557
        %1559 = vdwg.mxu0
        %1560 = vmatpush.msra.mxu0 0.0
        %1561 = vmatpush.msra.mxu0 0.0
        %1562 = vmatpush.msra.mxu0 0.0
        %1563 = vmatpush.msra.mxu0 0.0
        %1564 = vmatpush.msra.mxu0 0.0
        %1565 = vmatpush.msra.mxu0 0.0
        %1566 = vmatpush.msra.mxu0 0.0
        %1567 = vmatpush.msra.mxu0 0.0
        %1568 = vmatpush.msra.mxu0 0.0
        %1569 = vmatpush.msra.mxu0 0.0
        %1570 = vmatpush.msra.mxu0 0.0
        %1571 = vmatpush.msra.mxu0 0.0
        %v1572 = vand.u32 %v1448, 4294901760
        %1573 = vmatpush.msra.mxu0 %v1572
        %v1574 = vand.u32 %v1446, 4294901760
        %1575 = vmatpush.msra.mxu0 %v1574
        %v1576 = vand.u32 %v1444, 4294901760
        %1577 = vmatpush.msra.mxu0 %v1576
        %v1578 = vand.u32 %v1442, 4294901760
        %1579 = vmatpush.msra.mxu0 %v1578
        %v1580 = vand.u32 %v1458, 4294901760
        %v1581 = vsub.f32 %v1458, %v1580
        %v1582 = vand.u32 %v1581, 4294901760
        %1583 = vmatmul.f32.gmra.mxu0 %v1582
        %v1584 = vpop.f32.mrf.mxu0
        %v1585 = vadd.f32 %v1558, %v1584
        %1586 = vdwg.mxu0
        %1587 = vmatpush.msra.mxu0 0.0
        %1588 = vmatpush.msra.mxu0 0.0
        %1589 = vmatpush.msra.mxu0 0.0
        %1590 = vmatpush.msra.mxu0 0.0
        %1591 = vmatpush.msra.mxu0 0.0
        %1592 = vmatpush.msra.mxu0 0.0
        %1593 = vmatpush.msra.mxu0 0.0
        %1594 = vmatpush.msra.mxu0 0.0
        %1595 = vmatpush.msra.mxu0 0.0
        %1596 = vmatpush.msra.mxu0 0.0
        %1597 = vmatpush.msra.mxu0 0.0
        %1598 = vmatpush.msra.mxu0 0.0
        %v1599 = vand.u32 %v1448, 4294901760
        %v1600 = vsub.f32 %v1448, %v1599
        %v1601 = vand.u32 %v1600, 4294901760
        %1602 = vmatpush.msra.mxu0 %v1601
        %v1603 = vand.u32 %v1446, 4294901760
        %v1604 = vsub.f32 %v1446, %v1603
        %v1605 = vand.u32 %v1604, 4294901760
        %1606 = vmatpush.msra.mxu0 %v1605
        %v1607 = vand.u32 %v1444, 4294901760
        %v1608 = vsub.f32 %v1444, %v1607
        %v1609 = vand.u32 %v1608, 4294901760
        %1610 = vmatpush.msra.mxu0 %v1609
        %v1611 = vand.u32 %v1442, 4294901760
        %v1612 = vsub.f32 %v1442, %v1611
        %v1613 = vand.u32 %v1612, 4294901760
        %1614 = vmatpush.msra.mxu0 %v1613
        %v1615 = vand.u32 %v1458, 4294901760
        %1616 = vmatmul.f32.gmra.mxu0 %v1615
        %v1617 = vpop.f32.mrf.mxu0
        %v1618 = vadd.f32 %v1585, %v1617
        %1619 = vdwg.mxu0
        %1620 = vmatpush.msra.mxu0 0.0
        %1621 = vmatpush.msra.mxu0 0.0
        %1622 = vmatpush.msra.mxu0 0.0
        %1623 = vmatpush.msra.mxu0 0.0
        %1624 = vmatpush.msra.mxu0 0.0
        %1625 = vmatpush.msra.mxu0 0.0
        %1626 = vmatpush.msra.mxu0 0.0
        %1627 = vmatpush.msra.mxu0 0.0
        %1628 = vmatpush.msra.mxu0 0.0
        %1629 = vmatpush.msra.mxu0 0.0
        %1630 = vmatpush.msra.mxu0 0.0
        %1631 = vmatpush.msra.mxu0 0.0
        %v1632 = vand.u32 %v1448, 4294901760
        %1633 = vmatpush.msra.mxu0 %v1632
        %v1634 = vand.u32 %v1446, 4294901760
        %1635 = vmatpush.msra.mxu0 %v1634
        %v1636 = vand.u32 %v1444, 4294901760
        %1637 = vmatpush.msra.mxu0 %v1636
        %v1638 = vand.u32 %v1442, 4294901760
        %1639 = vmatpush.msra.mxu0 %v1638
        %v1640 = vand.u32 %v1458, 4294901760
        %1641 = vmatmul.f32.gmra.mxu0 %v1640
        %v1642 = vpop.f32.mrf.mxu0
        %v1643 = vadd.f32 %v1618, %v1642
        %1644 = vdwg.mxu0
        %1645 = vmatpush.msra.mxu0 0.0
        %1646 = vmatpush.msra.mxu0 0.0
        %1647 = vmatpush.msra.mxu0 0.0
        %1648 = vmatpush.msra.mxu0 0.0
        %1649 = vmatpush.msra.mxu0 0.0
        %1650 = vmatpush.msra.mxu0 0.0
        %1651 = vmatpush.msra.mxu0 0.0
        %1652 = vmatpush.msra.mxu0 0.0
        %1653 = vmatpush.msra.mxu0 0.0
        %1654 = vmatpush.msra.mxu0 0.0
        %1655 = vmatpush.msra.mxu0 0.0
        %1656 = vmatpush.msra.mxu0 0.0
        %v1657 = vand.u32 %v1449, 4294901760
        %1658 = vmatpush.msra.mxu0 %v1657
        %v1659 = vand.u32 %v1447, 4294901760
        %1660 = vmatpush.msra.mxu0 %v1659
        %v1661 = vand.u32 %v1445, 4294901760
        %1662 = vmatpush.msra.mxu0 %v1661
        %v1663 = vand.u32 %v1443, 4294901760
        %1664 = vmatpush.msra.mxu0 %v1663
        %v1665 = vand.u32 %v1458, 4294901760
        %v1666 = vsub.f32 %v1458, %v1665
        %v1667 = vand.u32 %v1666, 4294901760
        %v1668 = vsub.f32 %v1666, %v1667
        %v1669 = vand.u32 %v1668, 4294901760
        %1670 = vmatmul.f32.gmra.mxu0 %v1669
        %v1671 = vpop.f32.mrf.mxu0
        %v1672 = vadd.f32 %v1455, %v1671
        %1673 = vdwg.mxu0
        %1674 = vmatpush.msra.mxu0 0.0
        %1675 = vmatpush.msra.mxu0 0.0
        %1676 = vmatpush.msra.mxu0 0.0
        %1677 = vmatpush.msra.mxu0 0.0
        %1678 = vmatpush.msra.mxu0 0.0
        %1679 = vmatpush.msra.mxu0 0.0
        %1680 = vmatpush.msra.mxu0 0.0
        %1681 = vmatpush.msra.mxu0 0.0
        %1682 = vmatpush.msra.mxu0 0.0
        %1683 = vmatpush.msra.mxu0 0.0
        %1684 = vmatpush.msra.mxu0 0.0
        %1685 = vmatpush.msra.mxu0 0.0
        %v1686 = vand.u32 %v1449, 4294901760
        %v1687 = vsub.f32 %v1449, %v1686
        %v1688 = vand.u32 %v1687, 4294901760
        %v1689 = vsub.f32 %v1687, %v1688
        %v1690 = vand.u32 %v1689, 4294901760
        %1691 = vmatpush.msra.mxu0 %v1690
        %v1692 = vand.u32 %v1447, 4294901760
        %v1693 = vsub.f32 %v1447, %v1692
        %v1694 = vand.u32 %v1693, 4294901760
        %v1695 = vsub.f32 %v1693, %v1694
        %v1696 = vand.u32 %v1695, 4294901760
        %1697 = vmatpush.msra.mxu0 %v1696
        %v1698 = vand.u32 %v1445, 4294901760
        %v1699 = vsub.f32 %v1445, %v1698
        %v1700 = vand.u32 %v1699, 4294901760
        %v1701 = vsub.f32 %v1699, %v1700
        %v1702 = vand.u32 %v1701, 4294901760
        %1703 = vmatpush.msra.mxu0 %v1702
        %v1704 = vand.u32 %v1443, 4294901760
        %v1705 = vsub.f32 %v1443, %v1704
        %v1706 = vand.u32 %v1705, 4294901760
        %v1707 = vsub.f32 %v1705, %v1706
        %v1708 = vand.u32 %v1707, 4294901760
        %1709 = vmatpush.msra.mxu0 %v1708
        %v1710 = vand.u32 %v1458, 4294901760
        %1711 = vmatmul.f32.gmra.mxu0 %v1710
        %v1712 = vpop.f32.mrf.mxu0
        %v1713 = vadd.f32 %v1672, %v1712
        %1714 = vdwg.mxu0
        %1715 = vmatpush.msra.mxu0 0.0
        %1716 = vmatpush.msra.mxu0 0.0
        %1717 = vmatpush.msra.mxu0 0.0
        %1718 = vmatpush.msra.mxu0 0.0
        %1719 = vmatpush.msra.mxu0 0.0
        %1720 = vmatpush.msra.mxu0 0.0
        %1721 = vmatpush.msra.mxu0 0.0
        %1722 = vmatpush.msra.mxu0 0.0
        %1723 = vmatpush.msra.mxu0 0.0
        %1724 = vmatpush.msra.mxu0 0.0
        %1725 = vmatpush.msra.mxu0 0.0
        %1726 = vmatpush.msra.mxu0 0.0
        %v1727 = vand.u32 %v1449, 4294901760
        %v1728 = vsub.f32 %v1449, %v1727
        %1729 = vmatpush.msra.mxu0 %v1728
        %v1730 = vand.u32 %v1447, 4294901760
        %v1731 = vsub.f32 %v1447, %v1730
        %1732 = vmatpush.msra.mxu0 %v1731
        %v1733 = vand.u32 %v1445, 4294901760
        %v1734 = vsub.f32 %v1445, %v1733
        %1735 = vmatpush.msra.mxu0 %v1734
        %v1736 = vand.u32 %v1443, 4294901760
        %v1737 = vsub.f32 %v1443, %v1736
        %1738 = vmatpush.msra.mxu0 %v1737
        %v1739 = vand.u32 %v1458, 4294901760
        %v1740 = vsub.f32 %v1458, %v1739
        %1741 = vmatmul.f32.gmra.mxu0 %v1740
        %v1742 = vpop.f32.mrf.mxu0
        %v1743 = vadd.f32 %v1713, %v1742
        %1744 = vdwg.mxu0
        %1745 = vmatpush.msra.mxu0 0.0
        %1746 = vmatpush.msra.mxu0 0.0
        %1747 = vmatpush.msra.mxu0 0.0
        %1748 = vmatpush.msra.mxu0 0.0
        %1749 = vmatpush.msra.mxu0 0.0
        %1750 = vmatpush.msra.mxu0 0.0
        %1751 = vmatpush.msra.mxu0 0.0
        %1752 = vmatpush.msra.mxu0 0.0
        %1753 = vmatpush.msra.mxu0 0.0
        %1754 = vmatpush.msra.mxu0 0.0
        %1755 = vmatpush.msra.mxu0 0.0
        %1756 = vmatpush.msra.mxu0 0.0
        %v1757 = vand.u32 %v1449, 4294901760
        %1758 = vmatpush.msra.mxu0 %v1757
        %v1759 = vand.u32 %v1447, 4294901760
        %1760 = vmatpush.msra.mxu0 %v1759
        %v1761 = vand.u32 %v1445, 4294901760
        %1762 = vmatpush.msra.mxu0 %v1761
        %v1763 = vand.u32 %v1443, 4294901760
        %1764 = vmatpush.msra.mxu0 %v1763
        %v1765 = vand.u32 %v1458, 4294901760
        %v1766 = vsub.f32 %v1458, %v1765
        %v1767 = vand.u32 %v1766, 4294901760
        %1768 = vmatmul.f32.gmra.mxu0 %v1767
        %v1769 = vpop.f32.mrf.mxu0
        %v1770 = vadd.f32 %v1743, %v1769
        %1771 = vdwg.mxu0
        %1772 = vmatpush.msra.mxu0 0.0
        %1773 = vmatpush.msra.mxu0 0.0
        %1774 = vmatpush.msra.mxu0 0.0
        %1775 = vmatpush.msra.mxu0 0.0
        %1776 = vmatpush.msra.mxu0 0.0
        %1777 = vmatpush.msra.mxu0 0.0
        %1778 = vmatpush.msra.mxu0 0.0
        %1779 = vmatpush.msra.mxu0 0.0
        %1780 = vmatpush.msra.mxu0 0.0
        %1781 = vmatpush.msra.mxu0 0.0
        %1782 = vmatpush.msra.mxu0 0.0
        %1783 = vmatpush.msra.mxu0 0.0
        %v1784 = vand.u32 %v1449, 4294901760
        %v1785 = vsub.f32 %v1449, %v1784
        %v1786 = vand.u32 %v1785, 4294901760
        %1787 = vmatpush.msra.mxu0 %v1786
        %v1788 = vand.u32 %v1447, 4294901760
        %v1789 = vsub.f32 %v1447, %v1788
        %v1790 = vand.u32 %v1789, 4294901760
        %1791 = vmatpush.msra.mxu0 %v1790
        %v1792 = vand.u32 %v1445, 4294901760
        %v1793 = vsub.f32 %v1445, %v1792
        %v1794 = vand.u32 %v1793, 4294901760
        %1795 = vmatpush.msra.mxu0 %v1794
        %v1796 = vand.u32 %v1443, 4294901760
        %v1797 = vsub.f32 %v1443, %v1796
        %v1798 = vand.u32 %v1797, 4294901760
        %1799 = vmatpush.msra.mxu0 %v1798
        %v1800 = vand.u32 %v1458, 4294901760
        %1801 = vmatmul.f32.gmra.mxu0 %v1800
        %v1802 = vpop.f32.mrf.mxu0
        %v1803 = vadd.f32 %v1770, %v1802
        %1804 = vdwg.mxu0
        %1805 = vmatpush.msra.mxu0 0.0
        %1806 = vmatpush.msra.mxu0 0.0
        %1807 = vmatpush.msra.mxu0 0.0
        %1808 = vmatpush.msra.mxu0 0.0
        %1809 = vmatpush.msra.mxu0 0.0
        %1810 = vmatpush.msra.mxu0 0.0
        %1811 = vmatpush.msra.mxu0 0.0
        %1812 = vmatpush.msra.mxu0 0.0
        %1813 = vmatpush.msra.mxu0 0.0
        %1814 = vmatpush.msra.mxu0 0.0
        %1815 = vmatpush.msra.mxu0 0.0
        %1816 = vmatpush.msra.mxu0 0.0
        %v1817 = vand.u32 %v1449, 4294901760
        %1818 = vmatpush.msra.mxu0 %v1817
        %v1819 = vand.u32 %v1447, 4294901760
        %1820 = vmatpush.msra.mxu0 %v1819
        %v1821 = vand.u32 %v1445, 4294901760
        %1822 = vmatpush.msra.mxu0 %v1821
        %v1823 = vand.u32 %v1443, 4294901760
        %1824 = vmatpush.msra.mxu0 %v1823
        %v1825 = vand.u32 %v1458, 4294901760
        %1826 = vmatmul.f32.gmra.mxu0 %v1825
        %v1827 = vpop.f32.mrf.mxu0
        %v1828 = vadd.f32 %v1803, %v1827
        %1829 = vdwg.mxu0
        %1830 = vst [vmem:[%s296] sm:$0xff] %v1643
        %1831 = vst [vmem:[%s296 + $0x8] sm:$0xff] %v1828
        %s1832 = sand.u32 %s197, 1
        %s1833 = scalar_lea.sflag [#allocation3], %s1832
        %s1834 = sand.u32 %s197, 1
        %s1835 = smul.addr %s1834, 16
        %s1836 = scalar_lea.vmem [#allocation2], %s1835
        // Predicated region
        $region49: #{tpu_custom_call.1} parent=47 // pred_check
          %p1837 = pneg %p207
        $region50: #{tpu_custom_call.1} parent=47 // pred_check_branch
          %1839 = sbr.rel (%p1837) target = $region52
        $region51: #{tpu_custom_call.1} parent=47 // pred_region
          %s1840 = smul.u32 2, %s26
          %1842 = vsyncadd %s1833, 0
          %s1843 = smul.addr %s25, 2
          %s1844 = sadd.s32 %s1840, %s1843
          %s1845 = smul.addr %s1844, 8
          %s1846 = scalar_lea.hbm %s7, %s1845
          %s1848 = sshll.u32 %s1836, 4
          %s1849 = int_to_ptr.vmem [resolvable:$true] %s1848
          %s1850 = sshll.u32 %s1846, 4
          %s1851 = int_to_ptr.hbm [resolvable:$true] %s1850
          %1853 = dma.vmem_to_hbm [thread:$0]  %s1849, 256, %s1851, %s1833
        $region52: #{tpu_custom_call.1} parent=47 // pred_fallthru
          _
      $region48: #{tpu_custom_call.1} parent=5 // pred_fallthru
        _
      %p1854 = scmp.le.s32.totalorder 2, %s16
      // Predicated region
      $region53: #{tpu_custom_call.1} parent=5 // pred_check
        %p1855 = pneg %p1854
      $region54: #{tpu_custom_call.1} parent=5 // pred_check_branch
        %1857 = sbr.rel (%p1855) target = $region56
      $region55: #{tpu_custom_call.1} parent=5 // pred_region
        %s1858 = ssub.s32 %s16, 2
        // Predicated region
        $region57: #{tpu_custom_call.1} parent=55 // pred_check
          %p1859 = pneg %p213
        $region58: #{tpu_custom_call.1} parent=55 // pred_check_branch
          %1861 = sbr.rel (%p1859) target = $region60
        $region59: #{tpu_custom_call.1} parent=55 // pred_region
          %s1862 = sand.u32 %s198, 1
          %s1863 = scalar_lea.sflag [#allocation3], %s1862
          %s1864 = sand.u32 %s198, 1
          %s1865 = smul.addr %s1864, 16
          %s1866 = scalar_lea.vmem [#allocation2], %s1865
          %1868 = dma.done %s1863, 256
        $region60: #{tpu_custom_call.1} parent=55 // pred_fallthru
          _
      $region56: #{tpu_custom_call.1} parent=5 // pred_fallthru
        _
    $region6: #{tpu_custom_call.1} parent=1 // loop_footer
      %s20 = sadd.s32 1, %s16
    $region7: #{tpu_custom_call.1} parent=1 // loop_footer_branch
      %15 = sbr.rel target = $region3
    $region8: #{tpu_custom_call.1} parent=1 // loop_exit
      _
    %1869 = vsyncpa [#allocation3], 1
    %s1870 = scalar_lea.sflag [#allocation3], 1
    %1871 = vsyncpa %s1870, 1

</llo_original>
